<compile_context>
chip_gen: v7x
topology: tpu7x:2x2x1
jax: 0.10.0
libtpu: 0.0.40
codegen_flags: <defaults>
</compile_context>

<pallas_src>
import functools

import jax
import jax.numpy as jnp
from jax.experimental import pallas as pl
from jax.experimental.pallas import tpu as pltpu

_MIB = 2 ** 20

# Host/import-time hardware query: VMEM capacity decides how aggressive the
# tiles and vmem limit can be (v5e/v6e: 128 MiB, v7x: 64 MiB per TC).
try:
    _VMEM_CAP = int(pltpu.get_tpu_info().vmem_capacity_bytes)
except Exception:  # conservative (v7x-sized) fallback
    _VMEM_CAP = 64 * _MIB


def _round_up(x, m):
    return (x + m - 1) // m * m


def pick_hidden_tile(hidden_dim, preferred=512):
    """Largest th <= preferred that divides hidden_dim and is a multiple of 128."""
    assert hidden_dim % 128 == 0, "hidden_dim must be a multiple of 128"
    th = max(128, (min(preferred, hidden_dim) // 128) * 128)
    while hidden_dim % th != 0:
        th -= 128
    return th


def _ffn_kernel(x_ref, w13_ref, w2_ref, o_ref, acc_ref):
    # x_ref:   (tm, dim)     bf16 token tile (block index constant along h)
    # w13_ref: (dim, 2*th)   fused [W1^T | W3^T] hidden tile (leading dim squeezed)
    # w2_ref:  (th, dim)     W2^T hidden tile (leading dim squeezed)
    # o_ref:   (tm, dim)     output tile, written on the last hidden step
    # acc_ref: (tm, dim) f32 down-projection accumulator
    h = pl.program_id(1)

    @pl.when(h == 0)
    def _():
        acc_ref[...] = jnp.zeros_like(acc_ref)

    x = x_ref[...]
    th = w2_ref.shape[0]

    # Fused gate/up projection: one MXU matmul for both W1 and W3, f32 accum.
    gu = jnp.dot(x, w13_ref[...], preferred_element_type=jnp.float32)  # (tm, 2*th)
    gate = gu[:, :th]      # lane-aligned split (th % 128 == 0)
    up = gu[:, th:]

    # SiLU(gate) * up in f32 (EUP sigmoid, VPU muls).
    hidden = gate * jax.lax.logistic(gate) * up

    # Down projection, accumulated over hidden tiles in f32.
    acc_ref[...] += jnp.dot(hidden.astype(x.dtype), w2_ref[...],
                            preferred_element_type=jnp.float32)

    @pl.when(h == pl.num_programs(1) - 1)
    def _():
        o_ref[...] = acc_ref[...].astype(o_ref.dtype)


def prepare_ffn_weights(w1, w2, w3, *, th=None, compute_dtype=jnp.bfloat16):
    """One-time weight prep (call once, OUTSIDE the per-token-batch call path).

    PyTorch nn.Linear layout:  w1, w3: (hidden, dim);  w2: (dim, hidden).
    Returns:
      w13: (n_h, dim, 2*th)  per-hidden-tile fused [W1^T | W3^T]
      w2t: (n_h, th, dim)    per-hidden-tile W2^T
    """
    hidden, dim = w1.shape
    assert w3.shape == (hidden, dim) and w2.shape == (dim, hidden)
    if th is None:
        th = pick_hidden_tile(hidden)
    assert th % 128 == 0, "th must be a multiple of 128 (lane tile)"
    assert hidden % th == 0, "hidden tile th must divide hidden_dim"
    n_h = hidden // th

    w1t = jnp.asarray(w1, compute_dtype).T.reshape(dim, n_h, th)
    w3t = jnp.asarray(w3, compute_dtype).T.reshape(dim, n_h, th)
    w13 = jnp.transpose(jnp.concatenate([w1t, w3t], axis=-1), (1, 0, 2))
    w2t = jnp.asarray(w2, compute_dtype).T.reshape(n_h, th, dim)
    return w13, w2t


def _vmem_bytes(tm, th, dim, w_isz, out_isz):
    """Exact per-step VMEM footprint (double-buffered I/O + scratch + interms)."""
    return (2 * tm * dim * w_isz          # x tile
            + 2 * dim * 2 * th * w_isz    # fused [W1^T | W3^T] tile
            + 2 * th * dim * w_isz        # W2^T tile
            + 2 * tm * dim * out_isz      # output tile
            + tm * dim * 4                # f32 accumulator scratch
            + tm * 2 * th * 4             # f32 gate/up intermediate
            + tm * 2 * th * w_isz)        # bf16 hidden re-cast fed to MXU


@functools.partial(jax.jit, static_argnames=("tm",))
def feed_forward(x, w13, w2t, *, tm=None):
    """x: (batch, seq, dim) (preferably bf16);  w13/w2t from prepare_ffn_weights."""
    batch, seq, dim = x.shape
    n_h, _, two_th = w13.shape
    th = two_th // 2
    hidden = n_h * th
    compute_dtype = w13.dtype
    w_isz = jnp.dtype(compute_dtype).itemsize
    out_isz = w_isz  # output emitted in compute dtype (no f32 writeback pass)

    tokens = batch * seq

    # Generation-aware token tile: bigger tm => higher arithmetic intensity on
    # the weight stream (v6e roofline crossover ~640 FLOP/B -> tm~1024; v7x
    # ~310 FLOP/B -> tm~512, bounded by its 64 MiB VMEM).  Clamp to the padded
    # token count and shrink until the exact footprint fits the VMEM budget.
    if tm is None:
        tm_pref = 512 if _VMEM_CAP <= 64 * _MIB else 1024
        tm = min(tm_pref, _round_up(tokens, 256))
        budget = _VMEM_CAP - 12 * _MIB
        while tm > 256 and _vmem_bytes(tm, th, dim, w_isz, out_isz) > budget:
            tm = _round_up(tm // 2, 8)

    n_tm = pl.cdiv(tokens, tm)
    tokens_p = n_tm * tm

    xf = x.reshape(tokens, dim)
    if xf.dtype != compute_dtype:
        # Callers should keep activations in the compute dtype upstream so this
        # extra HBM pass is skipped.
        xf = xf.astype(compute_dtype)
    if tokens_p != tokens:
        # Zero-padded rows contribute exactly zero and are sliced off below.
        xf = jnp.pad(xf, ((0, tokens_p - tokens), (0, 0)))

    vmem_est = _vmem_bytes(tm, th, dim, w_isz, out_isz)
    vmem_limit = int(min(_VMEM_CAP - 4 * _MIB, max(32 * _MIB, vmem_est + 8 * _MIB)))

    cost = pl.CostEstimate(
        flops=(2 * tokens_p * dim * 2 * hidden      # fused gate/up matmul
               + 2 * tokens_p * hidden * dim        # down projection
               + 3 * tokens_p * hidden),            # silu * up elementwise
        transcendentals=tokens_p * hidden,          # sigmoid
        bytes_accessed=(2 * tokens_p * dim * w_isz
                        + n_tm * 3 * dim * hidden * w_isz),
    )

    out = pl.pallas_call(
        _ffn_kernel,
        out_shape=jax.ShapeDtypeStruct((tokens_p, dim), compute_dtype),
        grid_spec=pltpu.PrefetchScalarGridSpec(
            num_scalar_prefetch=0,
            grid=(n_tm, n_h),
            in_specs=[
                pl.BlockSpec((tm, dim), lambda i, h: (i, 0)),                   # x tile
                pl.BlockSpec((pl.Squeezed(), dim, 2 * th), lambda i, h: (h, 0, 0)),  # [W1^T|W3^T]
                pl.BlockSpec((pl.Squeezed(), th, dim), lambda i, h: (h, 0, 0)),      # W2^T
            ],
            out_specs=pl.BlockSpec((tm, dim), lambda i, h: (i, 0)),
            scratch_shapes=[pltpu.VMEM((tm, dim), jnp.float32)],
        ),
        compiler_params=pltpu.CompilerParams(
            dimension_semantics=("parallel", "arbitrary"),
            vmem_limit_bytes=vmem_limit,
        ),
        cost_estimate=cost,
    )(xf, w13, w2t)

    # TODO(synk): for decode-sized batches (n_tm == 1) on dual-TC chips (v7x),
    # add a second "parallel" grid axis over the output dim so both cores work.

    if tokens_p != tokens:
        out = out[:tokens]
    return out.reshape(batch, seq, dim)


def _reference(x, w1, w2, w3):
    gate = jnp.einsum("bsd,hd->bsh", x, w1)
    up = jnp.einsum("bsd,hd->bsh", x, w3)
    hidden = gate * jax.nn.sigmoid(gate) * up
    return jnp.einsum("bsh,dh->bsd", hidden, w2)


if __name__ == "__main__":
    # ModelArgs-style config (small, synthetic)
    dim = 64
    multiple_of = 256
    ffn_dim_multiplier = None
    hidden_dim = int(4 * dim * 2 / 3)
    if ffn_dim_multiplier:
        hidden_dim = int(hidden_dim * ffn_dim_multiplier)
    hidden_dim = multiple_of * ((hidden_dim + multiple_of - 1) // multiple_of)  # 256

    batch, seq = 2, 8

    key = jax.random.PRNGKey(0)
    kx, k1, k2, k3 = jax.random.split(key, 4)
    x = jax.random.normal(kx, (batch, seq, dim), dtype=jnp.float32)
    # deterministic synthetic weights in PyTorch nn.Linear layout (out, in)
    w1 = jax.random.normal(k1, (hidden_dim, dim), dtype=jnp.float32) * 0.02
    w2 = jax.random.normal(k2, (dim, hidden_dim), dtype=jnp.float32) * 0.02
    w3 = jax.random.normal(k3, (hidden_dim, dim), dtype=jnp.float32) * 0.02

    # Keep activations in bf16 upstream (no per-call f32->bf16 HBM pass).
    xb16 = x.astype(jnp.bfloat16)

    # Reference on bf16-rounded inputs (kernel computes in bf16 w/ f32 accum).
    xb = xb16.astype(jnp.float32)
    w1b = w1.astype(jnp.bfloat16).astype(jnp.float32)
    w2b = w2.astype(jnp.bfloat16).astype(jnp.float32)
    w3b = w3.astype(jnp.bfloat16).astype(jnp.float32)
    ref = _reference(xb, w1b, w2b, w3b)

    # (1) Production-style config: th picked automatically (512-capped divisor
    #     of hidden_dim -> 256 at these tiny demo dims), tm generation-aware.
    w13, w2t = prepare_ffn_weights(w1, w2, w3)
    out = jax.block_until_ready(feed_forward(xb16, w13, w2t))
    assert out.shape == (batch, seq, dim) and out.dtype == jnp.bfloat16
    o32 = out.astype(jnp.float32)
    assert jnp.allclose(o32, ref, atol=2e-3, rtol=2e-2), (
        float(jnp.max(jnp.abs(o32 - ref))))

    # (2) th=128 config: exercises the hidden-tile reduction (n_h=2) and the
    #     accumulator init / finalize path at these small demo dims.
    w13s, w2ts = prepare_ffn_weights(w1, w2, w3, th=128)
    outs = jax.block_until_ready(feed_forward(xb16, w13s, w2ts))
    o32s = outs.astype(jnp.float32)
    assert jnp.allclose(o32s, ref, atol=2e-3, rtol=2e-2), (
        float(jnp.max(jnp.abs(o32s - ref))))

    print("KERNEL_OK")
</pallas_src>

<mosaic_0001>
module attributes {stable_mosaic.version = 11 : i64} {
  func.func @_ffn_kernel(%arg0: i32, %arg1: i32, %arg2: memref<256x64xbf16, #tpu.memory_space<vmem>>, %arg3: memref<1x64x512xbf16, #tpu.memory_space<vmem>>, %arg4: memref<1x256x64xbf16, #tpu.memory_space<vmem>>, %arg5: memref<256x64xbf16, #tpu.memory_space<vmem>>, %arg6: memref<256x64xf32, #tpu.memory_space<vmem>>) attributes {dimension_semantics = [#tpu.dimension_semantics<parallel>, #tpu.dimension_semantics<arbitrary>], iteration_bounds = array<i64: 1, 1>, scalar_prefetch = 0 : i64, scratch_operands = 1 : i64, tpu.core_type = #tpu.core_type<tc>, window_params = [{transform_indices = @transform_0, window_bounds = array<i64: 256, 64>}, {transform_indices = @transform_1, window_bounds = array<i64: 1, 64, 512>}, {transform_indices = @transform_2, window_bounds = array<i64: 1, 256, 64>}, {transform_indices = @transform_3, window_bounds = array<i64: 256, 64>}]} {
    %c0_i32 = arith.constant 0 : i32
    %0 = arith.cmpi eq, %arg1, %c0_i32 : i32
    %1 = arith.extui %0 : i1 to i32
    %c0_i32_0 = arith.constant 0 : i32
    %2 = arith.cmpi ne, %1, %c0_i32_0 : i32
    scf.if %2 {
      %cst_16 = arith.constant 0.000000e+00 : f32
      %26 = vector.broadcast %cst_16 : f32 to vector<256x64xf32>
      %c0_17 = arith.constant 0 : index
      %c0_18 = arith.constant 0 : index
      %27 = vector.load %arg6[%c0_17, %c0_18] : memref<256x64xf32, #tpu.memory_space<vmem>>, vector<256x64xf32>
      tpu.vector_store %arg6[%c0_17, %c0_18], %26 {strides = array<i32>} : memref<256x64xf32, #tpu.memory_space<vmem>>, vector<256x64xf32>,
    } else {
    }
    %c0 = arith.constant 0 : index
    %c0_1 = arith.constant 0 : index
    %3 = vector.load %arg2[%c0, %c0_1] : memref<256x64xbf16, #tpu.memory_space<vmem>>, vector<256x64xbf16>
    %c0_2 = arith.constant 0 : index
    %c0_3 = arith.constant 0 : index
    %c0_4 = arith.constant 0 : index
    %4 = vector.load %arg3[%c0_2, %c0_3, %c0_4] : memref<1x64x512xbf16, #tpu.memory_space<vmem>>, vector<1x64x512xbf16>
    %5 = vector.shape_cast %4 : vector<1x64x512xbf16> to vector<64x512xbf16>
    %cst = arith.constant dense<0.000000e+00> : vector<256x512xf32>
    %6 = tpu.matmul %3, %5, %cst {dimension_numbers = #tpu.dot_dimension_numbers<[1], [0], [0], [1], [0, 0, 1, 1], [], []>} : vector<256x64xbf16>, vector<64x512xbf16>, vector<256x512xf32> -> vector<256x512xf32>
    %7 = vector.extract_strided_slice %6 {offsets = [0, 0], sizes = [256, 256], strides = [1, 1]} : vector<256x512xf32> to vector<256x256xf32>
    %8 = vector.extract_strided_slice %6 {offsets = [0, 256], sizes = [256, 256], strides = [1, 1]} : vector<256x512xf32> to vector<256x256xf32>
    %9 = arith.negf %7 : vector<256x256xf32>
    %10 = math.exp %9 : vector<256x256xf32>
    %cst_5 = arith.constant 1.000000e+00 : f32
    %11 = vector.broadcast %cst_5 : f32 to vector<256x256xf32>
    %12 = arith.addf %11, %10 : vector<256x256xf32>
    %13 = arith.divf %11, %12 : vector<256x256xf32>
    %14 = arith.mulf %7, %13 : vector<256x256xf32>
    %15 = arith.mulf %14, %8 : vector<256x256xf32>
    %c0_6 = arith.constant 0 : index
    %c0_7 = arith.constant 0 : index
    %16 = vector.load %arg6[%c0_6, %c0_7] : memref<256x64xf32, #tpu.memory_space<vmem>>, vector<256x64xf32>
    %17 = arith.truncf %15 : vector<256x256xf32> to vector<256x256xbf16>
    %c0_8 = arith.constant 0 : index
    %c0_9 = arith.constant 0 : index
    %c0_10 = arith.constant 0 : index
    %18 = vector.load %arg4[%c0_8, %c0_9, %c0_10] : memref<1x256x64xbf16, #tpu.memory_space<vmem>>, vector<1x256x64xbf16>
    %19 = vector.shape_cast %18 : vector<1x256x64xbf16> to vector<256x64xbf16>
    %cst_11 = arith.constant dense<0.000000e+00> : vector<256x64xf32>
    %20 = tpu.matmul %17, %19, %cst_11 {dimension_numbers = #tpu.dot_dimension_numbers<[1], [0], [0], [1], [0, 0, 1, 1], [], []>} : vector<256x256xbf16>, vector<256x64xbf16>, vector<256x64xf32> -> vector<256x64xf32>
    %21 = arith.addf %16, %20 : vector<256x64xf32>
    %c0_12 = arith.constant 0 : index
    %c0_13 = arith.constant 0 : index
    %22 = vector.load %arg6[%c0_12, %c0_13] : memref<256x64xf32, #tpu.memory_space<vmem>>, vector<256x64xf32>
    tpu.vector_store %arg6[%c0_12, %c0_13], %21 {strides = array<i32>} : memref<256x64xf32, #tpu.memory_space<vmem>>, vector<256x64xf32>,
    %c0_i32_14 = arith.constant 0 : i32
    %23 = arith.cmpi eq, %arg1, %c0_i32_14 : i32
    %24 = arith.extui %23 : i1 to i32
    %c0_i32_15 = arith.constant 0 : i32
    %25 = arith.cmpi ne, %24, %c0_i32_15 : i32
    scf.if %25 {
      %c0_16 = arith.constant 0 : index
      %c0_17 = arith.constant 0 : index
      %26 = vector.load %arg6[%c0_16, %c0_17] : memref<256x64xf32, #tpu.memory_space<vmem>>, vector<256x64xf32>
      %27 = arith.truncf %26 : vector<256x64xf32> to vector<256x64xbf16>
      %c0_18 = arith.constant 0 : index
      %c0_19 = arith.constant 0 : index
      %28 = vector.load %arg5[%c0_18, %c0_19] : memref<256x64xbf16, #tpu.memory_space<vmem>>, vector<256x64xbf16>
      tpu.vector_store %arg5[%c0_18, %c0_19], %27 {strides = array<i32>} : memref<256x64xbf16, #tpu.memory_space<vmem>>, vector<256x64xbf16>,
    } else {
    }
    return
  }
  func.func @transform_0(%arg0: i32, %arg1: i32) -> (i32, i32) {
    %c0_i32 = arith.constant 0 : i32
    %c0_i32_0 = arith.constant 0 : i32
    return %arg0, %c0_i32 : i32, i32
  }
  func.func @transform_1(%arg0: i32, %arg1: i32) -> (i32, i32, i32) {
    %c0_i32 = arith.constant 0 : i32
    %c0_i32_0 = arith.constant 0 : i32
    %c0_i32_1 = arith.constant 0 : i32
    return %arg1, %c0_i32, %c0_i32_0 : i32, i32, i32
  }
  func.func @transform_2(%arg0: i32, %arg1: i32) -> (i32, i32, i32) {
    %c0_i32 = arith.constant 0 : i32
    %c0_i32_0 = arith.constant 0 : i32
    %c0_i32_1 = arith.constant 0 : i32
    return %arg1, %c0_i32, %c0_i32_0 : i32, i32, i32
  }
  func.func @transform_3(%arg0: i32, %arg1: i32) -> (i32, i32) {
    %c0_i32 = arith.constant 0 : i32
    %c0_i32_0 = arith.constant 0 : i32
    return %arg0, %c0_i32 : i32, i32
  }
}

</mosaic_0001>

<llo_original>
// kernel: feed_forward.1
$region0: #{feed_forward.1}
  #allocation0 [shape = 'u32[]', space=smem, size = 0x4, offset = 0x4, fixed_abs, tag = 'smem constant byte address 0x4 - core index']
  #allocation1 [shape = 'u32[144,128]{1,0:T(1,128)}', space=vmem, size = 0x12000, scoped, tag = 'internal scratch']
  #allocation2 [shape = 'f32[256,64]{1,0:T(8,128)}', space=vmem, size = 0x20000, scoped, tag = 'scratch operand']
  %s0 = inlined_call_operand.vmem [shape: bf16[256,64], index: 0, kind: input, shape index: {}]
  %s1 = inlined_call_operand.vmem [shape: bf16[1,64,512], index: 1, kind: input, shape index: {}]
  %s2 = inlined_call_operand.vmem [shape: bf16[1,256,64], index: 2, kind: input, shape index: {}]
  %s3 = inlined_call_operand.vmem [shape: bf16[256,64], index: 3, kind: output, shape index: {}]
  %s4 = sld [smem:[#allocation0]]
  $region30: #{feed_forward.1} parent=0
    _
  %s6 = ssub.s32 1, %s4
  %s7 = scalar_select 0, %s6, %s4
  // Predicated region
  $region2: #{feed_forward.1} parent=0 // pred_check
    _
  $region3: #{feed_forward.1} parent=0 // pred_check_branch
    %9 = sbr.rel (0) target = $region5
  $region4: #{feed_forward.1} parent=0 // pred_region
    _
  $region5: #{feed_forward.1} parent=0 // pred_fallthru
    _
  // Predicated region
  $region6: #{feed_forward.1} parent=0 // pred_check
    _
  $region7: #{feed_forward.1} parent=0 // pred_check_branch
    %11 = sbr.rel (0) target = $region9
  $region8: #{feed_forward.1} parent=0 // pred_region
    _
  $region9: #{feed_forward.1} parent=0 // pred_fallthru
    _
  // Predicated region
  $region10: #{feed_forward.1} parent=0 // pred_check
    _
  $region11: #{feed_forward.1} parent=0 // pred_check_branch
    %13 = sbr.rel (0) target = $region13
  $region12: #{feed_forward.1} parent=0 // pred_region
    _
  $region13: #{feed_forward.1} parent=0 // pred_fallthru
    _
  %p15 = scmp.eq.s32.totalorder 0, 0
  // Predicated region
  $region14: #{feed_forward.1} parent=0 // pred_check
    %p16 = pneg %p15
  $region15: #{feed_forward.1} parent=0 // pred_check_branch
    %18 = sbr.rel (%p16) target = $region17
  $region16: #{feed_forward.1} parent=0 // pred_region
    %vm19 = vcmask 523264
    %20 = vst.msk [vmem:[#allocation2] sm:$0xff] %vm19, 0.0
    %21 = vst.msk [vmem:[#allocation2 + $0x8] sm:$0xff] %vm19, 0.0
    %22 = vst.msk [vmem:[#allocation2 + $0x10] sm:$0xff] %vm19, 0.0
    %23 = vst.msk [vmem:[#allocation2 + $0x18] sm:$0xff] %vm19, 0.0
    %24 = vst.msk [vmem:[#allocation2 + $0x20] sm:$0xff] %vm19, 0.0
    %25 = vst.msk [vmem:[#allocation2 + $0x28] sm:$0xff] %vm19, 0.0
    %26 = vst.msk [vmem:[#allocation2 + $0x30] sm:$0xff] %vm19, 0.0
    %27 = vst.msk [vmem:[#allocation2 + $0x38] sm:$0xff] %vm19, 0.0
    %28 = vst.msk [vmem:[#allocation2 + $0x40] sm:$0xff] %vm19, 0.0
    %29 = vst.msk [vmem:[#allocation2 + $0x48] sm:$0xff] %vm19, 0.0
    %30 = vst.msk [vmem:[#allocation2 + $0x50] sm:$0xff] %vm19, 0.0
    %31 = vst.msk [vmem:[#allocation2 + $0x58] sm:$0xff] %vm19, 0.0
    %32 = vst.msk [vmem:[#allocation2 + $0x60] sm:$0xff] %vm19, 0.0
    %33 = vst.msk [vmem:[#allocation2 + $0x68] sm:$0xff] %vm19, 0.0
    %34 = vst.msk [vmem:[#allocation2 + $0x70] sm:$0xff] %vm19, 0.0
    %35 = vst.msk [vmem:[#allocation2 + $0x78] sm:$0xff] %vm19, 0.0
    %36 = vst.msk [vmem:[#allocation2 + $0x80] sm:$0xff] %vm19, 0.0
    %37 = vst.msk [vmem:[#allocation2 + $0x88] sm:$0xff] %vm19, 0.0
    %38 = vst.msk [vmem:[#allocation2 + $0x90] sm:$0xff] %vm19, 0.0
    %39 = vst.msk [vmem:[#allocation2 + $0x98] sm:$0xff] %vm19, 0.0
    %40 = vst.msk [vmem:[#allocation2 + $0xa0] sm:$0xff] %vm19, 0.0
    %41 = vst.msk [vmem:[#allocation2 + $0xa8] sm:$0xff] %vm19, 0.0
    %42 = vst.msk [vmem:[#allocation2 + $0xb0] sm:$0xff] %vm19, 0.0
    %43 = vst.msk [vmem:[#allocation2 + $0xb8] sm:$0xff] %vm19, 0.0
    %44 = vst.msk [vmem:[#allocation2 + $0xc0] sm:$0xff] %vm19, 0.0
    %45 = vst.msk [vmem:[#allocation2 + $0xc8] sm:$0xff] %vm19, 0.0
    %46 = vst.msk [vmem:[#allocation2 + $0xd0] sm:$0xff] %vm19, 0.0
    %47 = vst.msk [vmem:[#allocation2 + $0xd8] sm:$0xff] %vm19, 0.0
    %48 = vst.msk [vmem:[#allocation2 + $0xe0] sm:$0xff] %vm19, 0.0
    %49 = vst.msk [vmem:[#allocation2 + $0xe8] sm:$0xff] %vm19, 0.0
    %50 = vst.msk [vmem:[#allocation2 + $0xf0] sm:$0xff] %vm19, 0.0
    %51 = vst.msk [vmem:[#allocation2 + $0xf8] sm:$0xff] %vm19, 0.0
  $region17: #{feed_forward.1} parent=0 // pred_fallthru
    _
  %v52 = vld [vmem:[%s0] sm:$0xf]
  %v53 = vld [vmem:[%s0 + $0x4] sm:$0xf]
  %v54 = vld [vmem:[%s0 + $0x8] sm:$0xf]
  %v55 = vld [vmem:[%s0 + $0xc] sm:$0xf]
  %v56 = vld [vmem:[%s0 + $0x10] sm:$0xf]
  %v57 = vld [vmem:[%s0 + $0x14] sm:$0xf]
  %v58 = vld [vmem:[%s0 + $0x18] sm:$0xf]
  %v59 = vld [vmem:[%s0 + $0x1c] sm:$0xf]
  %v60 = vld [vmem:[%s0 + $0x20] sm:$0xf]
  %v61 = vld [vmem:[%s0 + $0x24] sm:$0xf]
  %v62 = vld [vmem:[%s0 + $0x28] sm:$0xf]
  %v63 = vld [vmem:[%s0 + $0x2c] sm:$0xf]
  %v64 = vld [vmem:[%s0 + $0x30] sm:$0xf]
  %v65 = vld [vmem:[%s0 + $0x34] sm:$0xf]
  %v66 = vld [vmem:[%s0 + $0x38] sm:$0xf]
  %v67 = vld [vmem:[%s0 + $0x3c] sm:$0xf]
  %v68 = vld [vmem:[%s0 + $0x40] sm:$0xf]
  %v69 = vld [vmem:[%s0 + $0x44] sm:$0xf]
  %v70 = vld [vmem:[%s0 + $0x48] sm:$0xf]
  %v71 = vld [vmem:[%s0 + $0x4c] sm:$0xf]
  %v72 = vld [vmem:[%s0 + $0x50] sm:$0xf]
  %v73 = vld [vmem:[%s0 + $0x54] sm:$0xf]
  %v74 = vld [vmem:[%s0 + $0x58] sm:$0xf]
  %v75 = vld [vmem:[%s0 + $0x5c] sm:$0xf]
  %v76 = vld [vmem:[%s0 + $0x60] sm:$0xf]
  %v77 = vld [vmem:[%s0 + $0x64] sm:$0xf]
  %v78 = vld [vmem:[%s0 + $0x68] sm:$0xf]
  %v79 = vld [vmem:[%s0 + $0x6c] sm:$0xf]
  %v80 = vld [vmem:[%s0 + $0x70] sm:$0xf]
  %v81 = vld [vmem:[%s0 + $0x74] sm:$0xf]
  %v82 = vld [vmem:[%s0 + $0x78] sm:$0xf]
  %v83 = vld [vmem:[%s0 + $0x7c] sm:$0xf]
  %v84 = vld [vmem:[%s1] sm:$0xff]
  %v85 = vld [vmem:[%s1 + $0x8] sm:$0xff]
  %v86 = vld [vmem:[%s1 + $0x10] sm:$0xff]
  %v87 = vld [vmem:[%s1 + $0x18] sm:$0xff]
  %v88 = vld [vmem:[%s1 + $0x20] sm:$0xff]
  %v89 = vld [vmem:[%s1 + $0x28] sm:$0xff]
  %v90 = vld [vmem:[%s1 + $0x30] sm:$0xff]
  %v91 = vld [vmem:[%s1 + $0x38] sm:$0xff]
  %v92 = vld [vmem:[%s1 + $0x40] sm:$0xff]
  %v93 = vld [vmem:[%s1 + $0x48] sm:$0xff]
  %v94 = vld [vmem:[%s1 + $0x50] sm:$0xff]
  %v95 = vld [vmem:[%s1 + $0x58] sm:$0xff]
  %v96 = vld [vmem:[%s1 + $0x60] sm:$0xff]
  %v97 = vld [vmem:[%s1 + $0x68] sm:$0xff]
  %v98 = vld [vmem:[%s1 + $0x70] sm:$0xff]
  %v99 = vld [vmem:[%s1 + $0x78] sm:$0xff]
  %v132 = vunpack.c.l.b16 %v52
  %v133 = vunpack.c.l.b16 %v53
  %v134 = vunpack.c.l.b16 %v54
  %v135 = vunpack.c.l.b16 %v55
  %v136 = vunpack.c.l.b16 %v56
  %v137 = vunpack.c.l.b16 %v57
  %v138 = vunpack.c.l.b16 %v58
  %v139 = vunpack.c.l.b16 %v59
  %v140 = vunpack.c.l.b16 %v60
  %v141 = vunpack.c.l.b16 %v61
  %v142 = vunpack.c.l.b16 %v62
  %v143 = vunpack.c.l.b16 %v63
  %v144 = vunpack.c.l.b16 %v64
  %v145 = vunpack.c.l.b16 %v65
  %v146 = vunpack.c.l.b16 %v66
  %v147 = vunpack.c.l.b16 %v67
  %v148 = vunpack.c.l.b16 %v68
  %v149 = vunpack.c.l.b16 %v69
  %v150 = vunpack.c.l.b16 %v70
  %v151 = vunpack.c.l.b16 %v71
  %v152 = vunpack.c.l.b16 %v72
  %v153 = vunpack.c.l.b16 %v73
  %v154 = vunpack.c.l.b16 %v74
  %v155 = vunpack.c.l.b16 %v75
  %v156 = vunpack.c.l.b16 %v76
  %v157 = vunpack.c.l.b16 %v77
  %v158 = vunpack.c.l.b16 %v78
  %v159 = vunpack.c.l.b16 %v79
  %v160 = vunpack.c.l.b16 %v80
  %v161 = vunpack.c.l.b16 %v81
  %v162 = vunpack.c.l.b16 %v82
  %v163 = vunpack.c.l.b16 %v83
  %v164 = vpack.c.b16 %v133, %v132
  %v165 = vpack.c.b16 %v135, %v134
  %v166 = vpack.c.b16 %v137, %v136
  %v167 = vpack.c.b16 %v139, %v138
  %v168 = vpack.c.b16 %v141, %v140
  %v169 = vpack.c.b16 %v143, %v142
  %v170 = vpack.c.b16 %v145, %v144
  %v171 = vpack.c.b16 %v147, %v146
  %v172 = vpack.c.b16 %v149, %v148
  %v173 = vpack.c.b16 %v151, %v150
  %v174 = vpack.c.b16 %v153, %v152
  %v175 = vpack.c.b16 %v155, %v154
  %v176 = vpack.c.b16 %v157, %v156
  %v177 = vpack.c.b16 %v159, %v158
  %v178 = vpack.c.b16 %v161, %v160
  %v179 = vpack.c.b16 %v163, %v162
  %v196 = vunpack.c.l.b16 %v84
  %v197 = vunpack.c.h.b16 %v84
  %v198 = vunpack.c.l.b16 %v85
  %v199 = vunpack.c.h.b16 %v85
  %v200 = vunpack.c.l.b16 %v86
  %v201 = vunpack.c.h.b16 %v86
  %v202 = vunpack.c.l.b16 %v87
  %v203 = vunpack.c.h.b16 %v87
  %v204 = vunpack.c.l.b16 %v88
  %v205 = vunpack.c.h.b16 %v88
  %v206 = vunpack.c.l.b16 %v89
  %v207 = vunpack.c.h.b16 %v89
  %v208 = vunpack.c.l.b16 %v90
  %v209 = vunpack.c.h.b16 %v90
  %v210 = vunpack.c.l.b16 %v91
  %v211 = vunpack.c.h.b16 %v91
  %v212 = vunpack.c.l.b16 %v92
  %v213 = vunpack.c.h.b16 %v92
  %v214 = vunpack.c.l.b16 %v93
  %v215 = vunpack.c.h.b16 %v93
  %v216 = vunpack.c.l.b16 %v94
  %v217 = vunpack.c.h.b16 %v94
  %v218 = vunpack.c.l.b16 %v95
  %v219 = vunpack.c.h.b16 %v95
  %v220 = vunpack.c.l.b16 %v96
  %v221 = vunpack.c.h.b16 %v96
  %v222 = vunpack.c.l.b16 %v97
  %v223 = vunpack.c.h.b16 %v97
  %v224 = vunpack.c.l.b16 %v98
  %v225 = vunpack.c.h.b16 %v98
  %v226 = vunpack.c.l.b16 %v99
  %v227 = vunpack.c.h.b16 %v99
  %v228 = vpack.c.b16 %v200, %v196
  %v229 = vpack.c.b16 %v201, %v197
  %v230 = vpack.c.b16 %v202, %v198
  %v231 = vpack.c.b16 %v203, %v199
  %v232 = vpack.c.b16 %v208, %v204
  %v233 = vpack.c.b16 %v209, %v205
  %v234 = vpack.c.b16 %v210, %v206
  %v235 = vpack.c.b16 %v211, %v207
  %v236 = vpack.c.b16 %v216, %v212
  %v237 = vpack.c.b16 %v217, %v213
  %v238 = vpack.c.b16 %v218, %v214
  %v239 = vpack.c.b16 %v219, %v215
  %v240 = vpack.c.b16 %v224, %v220
  %v241 = vpack.c.b16 %v225, %v221
  %v242 = vpack.c.b16 %v226, %v222
  %v243 = vpack.c.b16 %v227, %v223
  %vm260 = vcmask 523264
  %v262 = vsel %vm260, %v164, 0
  %v265 = vsel %vm260, %v165, 0
  %v268 = vsel %vm260, %v166, 0
  %v271 = vsel %vm260, %v167, 0
  %v274 = vsel %vm260, %v168, 0
  %v277 = vsel %vm260, %v169, 0
  %v280 = vsel %vm260, %v170, 0
  %v283 = vsel %vm260, %v171, 0
  %v286 = vsel %vm260, %v172, 0
  %v289 = vsel %vm260, %v173, 0
  %v292 = vsel %vm260, %v174, 0
  %v295 = vsel %vm260, %v175, 0
  %v298 = vsel %vm260, %v176, 0
  %v301 = vsel %vm260, %v177, 0
  %v304 = vsel %vm260, %v178, 0
  %v307 = vsel %vm260, %v179, 0
  %309 = vmatprep.subr.bf16.mxu0 %v229
  %310 = vmatpush1.bf16.msra.mxu0 %v228
  %311 = vmatprep.subr.bf16.mxu0 %v233
  %312 = vmatpush1.bf16.msra.mxu0 %v232
  %313 = vmatprep.subr.bf16.mxu0 %v237
  %314 = vmatpush1.bf16.msra.mxu0 %v236
  %315 = vmatprep.subr.bf16.mxu0 %v241
  %316 = vmatpush1.bf16.msra.mxu0 %v240
  %317 = vmatprep.subr.bf16.mxu0 0
  %318 = vmatpush1.bf16.msra.mxu0 0
  %319 = vmatprep.subr.bf16.mxu0 0
  %320 = vmatpush1.bf16.msra.mxu0 0
  %321 = vmatprep.subr.bf16.mxu0 0
  %322 = vmatpush1.bf16.msra.mxu0 0
  %323 = vmatprep.subr.bf16.mxu0 0
  %324 = vmatpush1.bf16.msra.mxu0 0
  %325 = vmatprep.subr.bf16.mxu0 0
  %326 = vmatpush1.bf16.msra.mxu0 0
  %327 = vmatprep.subr.bf16.mxu0 0
  %328 = vmatpush1.bf16.msra.mxu0 0
  %329 = vmatprep.subr.bf16.mxu0 0
  %330 = vmatpush1.bf16.msra.mxu0 0
  %331 = vmatprep.subr.bf16.mxu0 0
  %332 = vmatpush1.bf16.msra.mxu0 0
  %333 = vmatprep.subr.bf16.mxu0 0
  %334 = vmatpush1.bf16.msra.mxu0 0
  %335 = vmatprep.subr.bf16.mxu0 0
  %336 = vmatpush1.bf16.msra.mxu0 0
  %337 = vmatprep.subr.bf16.mxu0 0
  %338 = vmatpush1.bf16.msra.mxu0 0
  %339 = vmatprep.subr.bf16.mxu0 0
  %340 = vmatpush1.bf16.msra.mxu0 0
  %341 = vmatprep.mubr.bf16.mxu0 0
  %342 = vmatmul.mubr.bf16.gmra.mrb[0].mxu0 %v262
  %v343 = vpop.f32.mrb[0].mxu0
  %v344 = vadd.f32 0.0, %v343
  %v345 = vpop.f32.mrb[0].mxu0
  %v346 = vadd.f32 0.0, %v345
  %v347 = vpop.f32.mrb[0].mxu0
  %v348 = vadd.f32 0.0, %v347
  %v349 = vpop.f32.mrb[0].mxu0
  %v350 = vadd.f32 0.0, %v349
  %351 = vmatprep.mubr.bf16.mxu0 0
  %352 = vmatmul.mubr.bf16.gmra.mrb[0].mxu0 %v265
  %v353 = vpop.f32.mrb[0].mxu0
  %v354 = vadd.f32 0.0, %v353
  %v355 = vpop.f32.mrb[0].mxu0
  %v356 = vadd.f32 0.0, %v355
  %v357 = vpop.f32.mrb[0].mxu0
  %v358 = vadd.f32 0.0, %v357
  %v359 = vpop.f32.mrb[0].mxu0
  %v360 = vadd.f32 0.0, %v359
  %361 = vmatprep.mubr.bf16.mxu0 0
  %362 = vmatmul.mubr.bf16.gmra.mrb[0].mxu0 %v268
  %v363 = vpop.f32.mrb[0].mxu0
  %v364 = vadd.f32 0.0, %v363
  %v365 = vpop.f32.mrb[0].mxu0
  %v366 = vadd.f32 0.0, %v365
  %v367 = vpop.f32.mrb[0].mxu0
  %v368 = vadd.f32 0.0, %v367
  %v369 = vpop.f32.mrb[0].mxu0
  %v370 = vadd.f32 0.0, %v369
  %371 = vmatprep.mubr.bf16.mxu0 0
  %372 = vmatmul.mubr.bf16.gmra.mrb[0].mxu0 %v271
  %v373 = vpop.f32.mrb[0].mxu0
  %v374 = vadd.f32 0.0, %v373
  %v375 = vpop.f32.mrb[0].mxu0
  %v376 = vadd.f32 0.0, %v375
  %v377 = vpop.f32.mrb[0].mxu0
  %v378 = vadd.f32 0.0, %v377
  %v379 = vpop.f32.mrb[0].mxu0
  %v380 = vadd.f32 0.0, %v379
  %381 = vmatprep.mubr.bf16.mxu0 0
  %382 = vmatmul.mubr.bf16.gmra.mrb[0].mxu0 %v274
  %v383 = vpop.f32.mrb[0].mxu0
  %v384 = vadd.f32 0.0, %v383
  %v385 = vpop.f32.mrb[0].mxu0
  %v386 = vadd.f32 0.0, %v385
  %v387 = vpop.f32.mrb[0].mxu0
  %v388 = vadd.f32 0.0, %v387
  %v389 = vpop.f32.mrb[0].mxu0
  %v390 = vadd.f32 0.0, %v389
  %391 = vmatprep.mubr.bf16.mxu0 0
  %392 = vmatmul.mubr.bf16.gmra.mrb[0].mxu0 %v277
  %v393 = vpop.f32.mrb[0].mxu0
  %v394 = vadd.f32 0.0, %v393
  %v395 = vpop.f32.mrb[0].mxu0
  %v396 = vadd.f32 0.0, %v395
  %v397 = vpop.f32.mrb[0].mxu0
  %v398 = vadd.f32 0.0, %v397
  %v399 = vpop.f32.mrb[0].mxu0
  %v400 = vadd.f32 0.0, %v399
  %401 = vmatprep.mubr.bf16.mxu0 0
  %402 = vmatmul.mubr.bf16.gmra.mrb[0].mxu0 %v280
  %v403 = vpop.f32.mrb[0].mxu0
  %v404 = vadd.f32 0.0, %v403
  %v405 = vpop.f32.mrb[0].mxu0
  %v406 = vadd.f32 0.0, %v405
  %v407 = vpop.f32.mrb[0].mxu0
  %v408 = vadd.f32 0.0, %v407
  %v409 = vpop.f32.mrb[0].mxu0
  %v410 = vadd.f32 0.0, %v409
  %411 = vmatprep.mubr.bf16.mxu0 0
  %412 = vmatmul.mubr.bf16.gmra.mrb[0].mxu0 %v283
  %v413 = vpop.f32.mrb[0].mxu0
  %v414 = vadd.f32 0.0, %v413
  %v415 = vpop.f32.mrb[0].mxu0
  %v416 = vadd.f32 0.0, %v415
  %v417 = vpop.f32.mrb[0].mxu0
  %v418 = vadd.f32 0.0, %v417
  %v419 = vpop.f32.mrb[0].mxu0
  %v420 = vadd.f32 0.0, %v419
  %421 = vmatprep.mubr.bf16.mxu0 0
  %422 = vmatmul.mubr.bf16.gmra.mrb[0].mxu0 %v286
  %v423 = vpop.f32.mrb[0].mxu0
  %v424 = vadd.f32 0.0, %v423
  %v425 = vpop.f32.mrb[0].mxu0
  %v426 = vadd.f32 0.0, %v425
  %v427 = vpop.f32.mrb[0].mxu0
  %v428 = vadd.f32 0.0, %v427
  %v429 = vpop.f32.mrb[0].mxu0
  %v430 = vadd.f32 0.0, %v429
  %431 = vmatprep.mubr.bf16.mxu0 0
  %432 = vmatmul.mubr.bf16.gmra.mrb[0].mxu0 %v289
  %v433 = vpop.f32.mrb[0].mxu0
  %v434 = vadd.f32 0.0, %v433
  %v435 = vpop.f32.mrb[0].mxu0
  %v436 = vadd.f32 0.0, %v435
  %v437 = vpop.f32.mrb[0].mxu0
  %v438 = vadd.f32 0.0, %v437
  %v439 = vpop.f32.mrb[0].mxu0
  %v440 = vadd.f32 0.0, %v439
  %441 = vmatprep.mubr.bf16.mxu0 0
  %442 = vmatmul.mubr.bf16.gmra.mrb[0].mxu0 %v292
  %v443 = vpop.f32.mrb[0].mxu0
  %v444 = vadd.f32 0.0, %v443
  %v445 = vpop.f32.mrb[0].mxu0
  %v446 = vadd.f32 0.0, %v445
  %v447 = vpop.f32.mrb[0].mxu0
  %v448 = vadd.f32 0.0, %v447
  %v449 = vpop.f32.mrb[0].mxu0
  %v450 = vadd.f32 0.0, %v449
  %451 = vmatprep.mubr.bf16.mxu0 0
  %452 = vmatmul.mubr.bf16.gmra.mrb[0].mxu0 %v295
  %v453 = vpop.f32.mrb[0].mxu0
  %v454 = vadd.f32 0.0, %v453
  %v455 = vpop.f32.mrb[0].mxu0
  %v456 = vadd.f32 0.0, %v455
  %v457 = vpop.f32.mrb[0].mxu0
  %v458 = vadd.f32 0.0, %v457
  %v459 = vpop.f32.mrb[0].mxu0
  %v460 = vadd.f32 0.0, %v459
  %461 = vmatprep.mubr.bf16.mxu0 0
  %462 = vmatmul.mubr.bf16.gmra.mrb[0].mxu0 %v298
  %v463 = vpop.f32.mrb[0].mxu0
  %v464 = vadd.f32 0.0, %v463
  %v465 = vpop.f32.mrb[0].mxu0
  %v466 = vadd.f32 0.0, %v465
  %v467 = vpop.f32.mrb[0].mxu0
  %v468 = vadd.f32 0.0, %v467
  %v469 = vpop.f32.mrb[0].mxu0
  %v470 = vadd.f32 0.0, %v469
  %471 = vmatprep.mubr.bf16.mxu0 0
  %472 = vmatmul.mubr.bf16.gmra.mrb[0].mxu0 %v301
  %v473 = vpop.f32.mrb[0].mxu0
  %v474 = vadd.f32 0.0, %v473
  %v475 = vpop.f32.mrb[0].mxu0
  %v476 = vadd.f32 0.0, %v475
  %v477 = vpop.f32.mrb[0].mxu0
  %v478 = vadd.f32 0.0, %v477
  %v479 = vpop.f32.mrb[0].mxu0
  %v480 = vadd.f32 0.0, %v479
  %481 = vmatprep.mubr.bf16.mxu0 0
  %482 = vmatmul.mubr.bf16.gmra.mrb[0].mxu0 %v304
  %v483 = vpop.f32.mrb[0].mxu0
  %v484 = vadd.f32 0.0, %v483
  %v485 = vpop.f32.mrb[0].mxu0
  %v486 = vadd.f32 0.0, %v485
  %v487 = vpop.f32.mrb[0].mxu0
  %v488 = vadd.f32 0.0, %v487
  %v489 = vpop.f32.mrb[0].mxu0
  %v490 = vadd.f32 0.0, %v489
  %491 = vmatprep.mubr.bf16.mxu0 0
  %492 = vmatmul.mubr.bf16.gmra.mrb[0].mxu0 %v307
  %v493 = vpop.f32.mrb[0].mxu0
  %v494 = vadd.f32 0.0, %v493
  %v495 = vpop.f32.mrb[0].mxu0
  %v496 = vadd.f32 0.0, %v495
  %v497 = vpop.f32.mrb[0].mxu0
  %v498 = vadd.f32 0.0, %v497
  %v499 = vpop.f32.mrb[0].mxu0
  %v500 = vadd.f32 0.0, %v499
  %501 = vdwg.mxu0
  %502 = vmatprep.subr.bf16.mxu0 %v231
  %503 = vmatpush1.bf16.msra.mxu0 %v230
  %504 = vmatprep.subr.bf16.mxu0 %v235
  %505 = vmatpush1.bf16.msra.mxu0 %v234
  %506 = vmatprep.subr.bf16.mxu0 %v239
  %507 = vmatpush1.bf16.msra.mxu0 %v238
  %508 = vmatprep.subr.bf16.mxu0 %v243
  %509 = vmatpush1.bf16.msra.mxu0 %v242
  %510 = vmatprep.subr.bf16.mxu0 0
  %511 = vmatpush1.bf16.msra.mxu0 0
  %512 = vmatprep.subr.bf16.mxu0 0
  %513 = vmatpush1.bf16.msra.mxu0 0
  %514 = vmatprep.subr.bf16.mxu0 0
  %515 = vmatpush1.bf16.msra.mxu0 0
  %516 = vmatprep.subr.bf16.mxu0 0
  %517 = vmatpush1.bf16.msra.mxu0 0
  %518 = vmatprep.subr.bf16.mxu0 0
  %519 = vmatpush1.bf16.msra.mxu0 0
  %520 = vmatprep.subr.bf16.mxu0 0
  %521 = vmatpush1.bf16.msra.mxu0 0
  %522 = vmatprep.subr.bf16.mxu0 0
  %523 = vmatpush1.bf16.msra.mxu0 0
  %524 = vmatprep.subr.bf16.mxu0 0
  %525 = vmatpush1.bf16.msra.mxu0 0
  %526 = vmatprep.subr.bf16.mxu0 0
  %527 = vmatpush1.bf16.msra.mxu0 0
  %528 = vmatprep.subr.bf16.mxu0 0
  %529 = vmatpush1.bf16.msra.mxu0 0
  %530 = vmatprep.subr.bf16.mxu0 0
  %531 = vmatpush1.bf16.msra.mxu0 0
  %532 = vmatprep.subr.bf16.mxu0 0
  %533 = vmatpush1.bf16.msra.mxu0 0
  %534 = vmatprep.mubr.bf16.mxu0 0
  %535 = vmatmul.mubr.bf16.gmra.mrb[0].mxu0 %v262
  %v536 = vpop.f32.mrb[0].mxu0
  %v537 = vadd.f32 0.0, %v536
  %v538 = vpop.f32.mrb[0].mxu0
  %v539 = vadd.f32 0.0, %v538
  %v540 = vpop.f32.mrb[0].mxu0
  %v541 = vadd.f32 0.0, %v540
  %v542 = vpop.f32.mrb[0].mxu0
  %v543 = vadd.f32 0.0, %v542
  %544 = vmatprep.mubr.bf16.mxu0 0
  %545 = vmatmul.mubr.bf16.gmra.mrb[0].mxu0 %v265
  %v546 = vpop.f32.mrb[0].mxu0
  %v547 = vadd.f32 0.0, %v546
  %v548 = vpop.f32.mrb[0].mxu0
  %v549 = vadd.f32 0.0, %v548
  %v550 = vpop.f32.mrb[0].mxu0
  %v551 = vadd.f32 0.0, %v550
  %v552 = vpop.f32.mrb[0].mxu0
  %v553 = vadd.f32 0.0, %v552
  %554 = vmatprep.mubr.bf16.mxu0 0
  %555 = vmatmul.mubr.bf16.gmra.mrb[0].mxu0 %v268
  %v556 = vpop.f32.mrb[0].mxu0
  %v557 = vadd.f32 0.0, %v556
  %v558 = vpop.f32.mrb[0].mxu0
  %v559 = vadd.f32 0.0, %v558
  %v560 = vpop.f32.mrb[0].mxu0
  %v561 = vadd.f32 0.0, %v560
  %v562 = vpop.f32.mrb[0].mxu0
  %v563 = vadd.f32 0.0, %v562
  %564 = vmatprep.mubr.bf16.mxu0 0
  %565 = vmatmul.mubr.bf16.gmra.mrb[0].mxu0 %v271
  %v566 = vpop.f32.mrb[0].mxu0
  %v567 = vadd.f32 0.0, %v566
  %v568 = vpop.f32.mrb[0].mxu0
  %v569 = vadd.f32 0.0, %v568
  %v570 = vpop.f32.mrb[0].mxu0
  %v571 = vadd.f32 0.0, %v570
  %v572 = vpop.f32.mrb[0].mxu0
  %v573 = vadd.f32 0.0, %v572
  %574 = vmatprep.mubr.bf16.mxu0 0
  %575 = vmatmul.mubr.bf16.gmra.mrb[0].mxu0 %v274
  %v576 = vpop.f32.mrb[0].mxu0
  %v577 = vadd.f32 0.0, %v576
  %v578 = vpop.f32.mrb[0].mxu0
  %v579 = vadd.f32 0.0, %v578
  %v580 = vpop.f32.mrb[0].mxu0
  %v581 = vadd.f32 0.0, %v580
  %v582 = vpop.f32.mrb[0].mxu0
  %v583 = vadd.f32 0.0, %v582
  %584 = vmatprep.mubr.bf16.mxu0 0
  %585 = vmatmul.mubr.bf16.gmra.mrb[0].mxu0 %v277
  %v586 = vpop.f32.mrb[0].mxu0
  %v587 = vadd.f32 0.0, %v586
  %v588 = vpop.f32.mrb[0].mxu0
  %v589 = vadd.f32 0.0, %v588
  %v590 = vpop.f32.mrb[0].mxu0
  %v591 = vadd.f32 0.0, %v590
  %v592 = vpop.f32.mrb[0].mxu0
  %v593 = vadd.f32 0.0, %v592
  %594 = vmatprep.mubr.bf16.mxu0 0
  %595 = vmatmul.mubr.bf16.gmra.mrb[0].mxu0 %v280
  %v596 = vpop.f32.mrb[0].mxu0
  %v597 = vadd.f32 0.0, %v596
  %v598 = vpop.f32.mrb[0].mxu0
  %v599 = vadd.f32 0.0, %v598
  %v600 = vpop.f32.mrb[0].mxu0
  %v601 = vadd.f32 0.0, %v600
  %v602 = vpop.f32.mrb[0].mxu0
  %v603 = vadd.f32 0.0, %v602
  %604 = vmatprep.mubr.bf16.mxu0 0
  %605 = vmatmul.mubr.bf16.gmra.mrb[0].mxu0 %v283
  %v606 = vpop.f32.mrb[0].mxu0
  %v607 = vadd.f32 0.0, %v606
  %v608 = vpop.f32.mrb[0].mxu0
  %v609 = vadd.f32 0.0, %v608
  %v610 = vpop.f32.mrb[0].mxu0
  %v611 = vadd.f32 0.0, %v610
  %v612 = vpop.f32.mrb[0].mxu0
  %v613 = vadd.f32 0.0, %v612
  %614 = vmatprep.mubr.bf16.mxu0 0
  %615 = vmatmul.mubr.bf16.gmra.mrb[0].mxu0 %v286
  %v616 = vpop.f32.mrb[0].mxu0
  %v617 = vadd.f32 0.0, %v616
  %v618 = vpop.f32.mrb[0].mxu0
  %v619 = vadd.f32 0.0, %v618
  %v620 = vpop.f32.mrb[0].mxu0
  %v621 = vadd.f32 0.0, %v620
  %v622 = vpop.f32.mrb[0].mxu0
  %v623 = vadd.f32 0.0, %v622
  %624 = vmatprep.mubr.bf16.mxu0 0
  %625 = vmatmul.mubr.bf16.gmra.mrb[0].mxu0 %v289
  %v626 = vpop.f32.mrb[0].mxu0
  %v627 = vadd.f32 0.0, %v626
  %v628 = vpop.f32.mrb[0].mxu0
  %v629 = vadd.f32 0.0, %v628
  %v630 = vpop.f32.mrb[0].mxu0
  %v631 = vadd.f32 0.0, %v630
  %v632 = vpop.f32.mrb[0].mxu0
  %v633 = vadd.f32 0.0, %v632
  %634 = vmatprep.mubr.bf16.mxu0 0
  %635 = vmatmul.mubr.bf16.gmra.mrb[0].mxu0 %v292
  %v636 = vpop.f32.mrb[0].mxu0
  %v637 = vadd.f32 0.0, %v636
  %v638 = vpop.f32.mrb[0].mxu0
  %v639 = vadd.f32 0.0, %v638
  %v640 = vpop.f32.mrb[0].mxu0
  %v641 = vadd.f32 0.0, %v640
  %v642 = vpop.f32.mrb[0].mxu0
  %v643 = vadd.f32 0.0, %v642
  %644 = vmatprep.mubr.bf16.mxu0 0
  %645 = vmatmul.mubr.bf16.gmra.mrb[0].mxu0 %v295
  %v646 = vpop.f32.mrb[0].mxu0
  %v647 = vadd.f32 0.0, %v646
  %v648 = vpop.f32.mrb[0].mxu0
  %v649 = vadd.f32 0.0, %v648
  %v650 = vpop.f32.mrb[0].mxu0
  %v651 = vadd.f32 0.0, %v650
  %v652 = vpop.f32.mrb[0].mxu0
  %v653 = vadd.f32 0.0, %v652
  %654 = vmatprep.mubr.bf16.mxu0 0
  %655 = vmatmul.mubr.bf16.gmra.mrb[0].mxu0 %v298
  %v656 = vpop.f32.mrb[0].mxu0
  %v657 = vadd.f32 0.0, %v656
  %v658 = vpop.f32.mrb[0].mxu0
  %v659 = vadd.f32 0.0, %v658
  %v660 = vpop.f32.mrb[0].mxu0
  %v661 = vadd.f32 0.0, %v660
  %v662 = vpop.f32.mrb[0].mxu0
  %v663 = vadd.f32 0.0, %v662
  %664 = vmatprep.mubr.bf16.mxu0 0
  %665 = vmatmul.mubr.bf16.gmra.mrb[0].mxu0 %v301
  %v666 = vpop.f32.mrb[0].mxu0
  %v667 = vadd.f32 0.0, %v666
  %v668 = vpop.f32.mrb[0].mxu0
  %v669 = vadd.f32 0.0, %v668
  %v670 = vpop.f32.mrb[0].mxu0
  %v671 = vadd.f32 0.0, %v670
  %v672 = vpop.f32.mrb[0].mxu0
  %v673 = vadd.f32 0.0, %v672
  %674 = vmatprep.mubr.bf16.mxu0 0
  %675 = vmatmul.mubr.bf16.gmra.mrb[0].mxu0 %v304
  %v676 = vpop.f32.mrb[0].mxu0
  %v677 = vadd.f32 0.0, %v676
  %v678 = vpop.f32.mrb[0].mxu0
  %v679 = vadd.f32 0.0, %v678
  %v680 = vpop.f32.mrb[0].mxu0
  %v681 = vadd.f32 0.0, %v680
  %v682 = vpop.f32.mrb[0].mxu0
  %v683 = vadd.f32 0.0, %v682
  %684 = vmatprep.mubr.bf16.mxu0 0
  %685 = vmatmul.mubr.bf16.gmra.mrb[0].mxu0 %v307
  %v686 = vpop.f32.mrb[0].mxu0
  %v687 = vadd.f32 0.0, %v686
  %v688 = vpop.f32.mrb[0].mxu0
  %v689 = vadd.f32 0.0, %v688
  %v690 = vpop.f32.mrb[0].mxu0
  %v691 = vadd.f32 0.0, %v690
  %v692 = vpop.f32.mrb[0].mxu0
  %v693 = vadd.f32 0.0, %v692
  %694 = vdwg.mxu0
  %v695 = vxor.u32 %v344, 2147483648
  %v696 = vxor.u32 %v346, 2147483648
  %v697 = vxor.u32 %v348, 2147483648
  %v698 = vxor.u32 %v350, 2147483648
  %v699 = vxor.u32 %v354, 2147483648
  %v700 = vxor.u32 %v356, 2147483648
  %v701 = vxor.u32 %v358, 2147483648
  %v702 = vxor.u32 %v360, 2147483648
  %v703 = vxor.u32 %v364, 2147483648
  %v704 = vxor.u32 %v366, 2147483648
  %v705 = vxor.u32 %v368, 2147483648
  %v706 = vxor.u32 %v370, 2147483648
  %v707 = vxor.u32 %v374, 2147483648
  %v708 = vxor.u32 %v376, 2147483648
  %v709 = vxor.u32 %v378, 2147483648
  %v710 = vxor.u32 %v380, 2147483648
  %v711 = vxor.u32 %v384, 2147483648
  %v712 = vxor.u32 %v386, 2147483648
  %v713 = vxor.u32 %v388, 2147483648
  %v714 = vxor.u32 %v390, 2147483648
  %v715 = vxor.u32 %v394, 2147483648
  %v716 = vxor.u32 %v396, 2147483648
  %v717 = vxor.u32 %v398, 2147483648
  %v718 = vxor.u32 %v400, 2147483648
  %v719 = vxor.u32 %v404, 2147483648
  %v720 = vxor.u32 %v406, 2147483648
  %v721 = vxor.u32 %v408, 2147483648
  %v722 = vxor.u32 %v410, 2147483648
  %v723 = vxor.u32 %v414, 2147483648
  %v724 = vxor.u32 %v416, 2147483648
  %v725 = vxor.u32 %v418, 2147483648
  %v726 = vxor.u32 %v420, 2147483648
  %v727 = vxor.u32 %v424, 2147483648
  %v728 = vxor.u32 %v426, 2147483648
  %v729 = vxor.u32 %v428, 2147483648
  %v730 = vxor.u32 %v430, 2147483648
  %v731 = vxor.u32 %v434, 2147483648
  %v732 = vxor.u32 %v436, 2147483648
  %v733 = vxor.u32 %v438, 2147483648
  %v734 = vxor.u32 %v440, 2147483648
  %v735 = vxor.u32 %v444, 2147483648
  %v736 = vxor.u32 %v446, 2147483648
  %v737 = vxor.u32 %v448, 2147483648
  %v738 = vxor.u32 %v450, 2147483648
  %v739 = vxor.u32 %v454, 2147483648
  %v740 = vxor.u32 %v456, 2147483648
  %v741 = vxor.u32 %v458, 2147483648
  %v742 = vxor.u32 %v460, 2147483648
  %v743 = vxor.u32 %v464, 2147483648
  %v744 = vxor.u32 %v466, 2147483648
  %v745 = vxor.u32 %v468, 2147483648
  %v746 = vxor.u32 %v470, 2147483648
  %v747 = vxor.u32 %v474, 2147483648
  %v748 = vxor.u32 %v476, 2147483648
  %v749 = vxor.u32 %v478, 2147483648
  %v750 = vxor.u32 %v480, 2147483648
  %v751 = vxor.u32 %v484, 2147483648
  %v752 = vxor.u32 %v486, 2147483648
  %v753 = vxor.u32 %v488, 2147483648
  %v754 = vxor.u32 %v490, 2147483648
  %v755 = vxor.u32 %v494, 2147483648
  %v756 = vxor.u32 %v496, 2147483648
  %v757 = vxor.u32 %v498, 2147483648
  %v758 = vxor.u32 %v500, 2147483648
  %v759 = vmul.f32 %v695, 1.442695
  %v760 = vpow.pop %v759
  %v761 = vmul.f32 %v696, 1.442695
  %v762 = vpow.pop %v761
  %v763 = vmul.f32 %v697, 1.442695
  %v764 = vpow.pop %v763
  %v765 = vmul.f32 %v698, 1.442695
  %v766 = vpow.pop %v765
  %v767 = vmul.f32 %v699, 1.442695
  %v768 = vpow.pop %v767
  %v769 = vmul.f32 %v700, 1.442695
  %v770 = vpow.pop %v769
  %v771 = vmul.f32 %v701, 1.442695
  %v772 = vpow.pop %v771
  %v773 = vmul.f32 %v702, 1.442695
  %v774 = vpow.pop %v773
  %v775 = vmul.f32 %v703, 1.442695
  %v776 = vpow.pop %v775
  %v777 = vmul.f32 %v704, 1.442695
  %v778 = vpow.pop %v777
  %v779 = vmul.f32 %v705, 1.442695
  %v780 = vpow.pop %v779
  %v781 = vmul.f32 %v706, 1.442695
  %v782 = vpow.pop %v781
  %v783 = vmul.f32 %v707, 1.442695
  %v784 = vpow.pop %v783
  %v785 = vmul.f32 %v708, 1.442695
  %v786 = vpow.pop %v785
  %v787 = vmul.f32 %v709, 1.442695
  %v788 = vpow.pop %v787
  %v789 = vmul.f32 %v710, 1.442695
  %v790 = vpow.pop %v789
  %v791 = vmul.f32 %v711, 1.442695
  %v792 = vpow.pop %v791
  %v793 = vmul.f32 %v712, 1.442695
  %v794 = vpow.pop %v793
  %v795 = vmul.f32 %v713, 1.442695
  %v796 = vpow.pop %v795
  %v797 = vmul.f32 %v714, 1.442695
  %v798 = vpow.pop %v797
  %v799 = vmul.f32 %v715, 1.442695
  %v800 = vpow.pop %v799
  %v801 = vmul.f32 %v716, 1.442695
  %v802 = vpow.pop %v801
  %v803 = vmul.f32 %v717, 1.442695
  %v804 = vpow.pop %v803
  %v805 = vmul.f32 %v718, 1.442695
  %v806 = vpow.pop %v805
  %v807 = vmul.f32 %v719, 1.442695
  %v808 = vpow.pop %v807
  %v809 = vmul.f32 %v720, 1.442695
  %v810 = vpow.pop %v809
  %v811 = vmul.f32 %v721, 1.442695
  %v812 = vpow.pop %v811
  %v813 = vmul.f32 %v722, 1.442695
  %v814 = vpow.pop %v813
  %v815 = vmul.f32 %v723, 1.442695
  %v816 = vpow.pop %v815
  %v817 = vmul.f32 %v724, 1.442695
  %v818 = vpow.pop %v817
  %v819 = vmul.f32 %v725, 1.442695
  %v820 = vpow.pop %v819
  %v821 = vmul.f32 %v726, 1.442695
  %v822 = vpow.pop %v821
  %v823 = vmul.f32 %v727, 1.442695
  %v824 = vpow.pop %v823
  %v825 = vmul.f32 %v728, 1.442695
  %v826 = vpow.pop %v825
  %v827 = vmul.f32 %v729, 1.442695
  %v828 = vpow.pop %v827
  %v829 = vmul.f32 %v730, 1.442695
  %v830 = vpow.pop %v829
  %v831 = vmul.f32 %v731, 1.442695
  %v832 = vpow.pop %v831
  %v833 = vmul.f32 %v732, 1.442695
  %v834 = vpow.pop %v833
  %v835 = vmul.f32 %v733, 1.442695
  %v836 = vpow.pop %v835
  %v837 = vmul.f32 %v734, 1.442695
  %v838 = vpow.pop %v837
  %v839 = vmul.f32 %v735, 1.442695
  %v840 = vpow.pop %v839
  %v841 = vmul.f32 %v736, 1.442695
  %v842 = vpow.pop %v841
  %v843 = vmul.f32 %v737, 1.442695
  %v844 = vpow.pop %v843
  %v845 = vmul.f32 %v738, 1.442695
  %v846 = vpow.pop %v845
  %v847 = vmul.f32 %v739, 1.442695
  %v848 = vpow.pop %v847
  %v849 = vmul.f32 %v740, 1.442695
  %v850 = vpow.pop %v849
  %v851 = vmul.f32 %v741, 1.442695
  %v852 = vpow.pop %v851
  %v853 = vmul.f32 %v742, 1.442695
  %v854 = vpow.pop %v853
  %v855 = vmul.f32 %v743, 1.442695
  %v856 = vpow.pop %v855
  %v857 = vmul.f32 %v744, 1.442695
  %v858 = vpow.pop %v857
  %v859 = vmul.f32 %v745, 1.442695
  %v860 = vpow.pop %v859
  %v861 = vmul.f32 %v746, 1.442695
  %v862 = vpow.pop %v861
  %v863 = vmul.f32 %v747, 1.442695
  %v864 = vpow.pop %v863
  %v865 = vmul.f32 %v748, 1.442695
  %v866 = vpow.pop %v865
  %v867 = vmul.f32 %v749, 1.442695
  %v868 = vpow.pop %v867
  %v869 = vmul.f32 %v750, 1.442695
  %v870 = vpow.pop %v869
  %v871 = vmul.f32 %v751, 1.442695
  %v872 = vpow.pop %v871
  %v873 = vmul.f32 %v752, 1.442695
  %v874 = vpow.pop %v873
  %v875 = vmul.f32 %v753, 1.442695
  %v876 = vpow.pop %v875
  %v877 = vmul.f32 %v754, 1.442695
  %v878 = vpow.pop %v877
  %v879 = vmul.f32 %v755, 1.442695
  %v880 = vpow.pop %v879
  %v881 = vmul.f32 %v756, 1.442695
  %v882 = vpow.pop %v881
  %v883 = vmul.f32 %v757, 1.442695
  %v884 = vpow.pop %v883
  %v885 = vmul.f32 %v758, 1.442695
  %v886 = vpow.pop %v885
  %v887 = vadd.f32 %v760, 1.0
  %v888 = vadd.f32 %v762, 1.0
  %v889 = vadd.f32 %v764, 1.0
  %v890 = vadd.f32 %v766, 1.0
  %v891 = vadd.f32 %v768, 1.0
  %v892 = vadd.f32 %v770, 1.0
  %v893 = vadd.f32 %v772, 1.0
  %v894 = vadd.f32 %v774, 1.0
  %v895 = vadd.f32 %v776, 1.0
  %v896 = vadd.f32 %v778, 1.0
  %v897 = vadd.f32 %v780, 1.0
  %v898 = vadd.f32 %v782, 1.0
  %v899 = vadd.f32 %v784, 1.0
  %v900 = vadd.f32 %v786, 1.0
  %v901 = vadd.f32 %v788, 1.0
  %v902 = vadd.f32 %v790, 1.0
  %v903 = vadd.f32 %v792, 1.0
  %v904 = vadd.f32 %v794, 1.0
  %v905 = vadd.f32 %v796, 1.0
  %v906 = vadd.f32 %v798, 1.0
  %v907 = vadd.f32 %v800, 1.0
  %v908 = vadd.f32 %v802, 1.0
  %v909 = vadd.f32 %v804, 1.0
  %v910 = vadd.f32 %v806, 1.0
  %v911 = vadd.f32 %v808, 1.0
  %v912 = vadd.f32 %v810, 1.0
  %v913 = vadd.f32 %v812, 1.0
  %v914 = vadd.f32 %v814, 1.0
  %v915 = vadd.f32 %v816, 1.0
  %v916 = vadd.f32 %v818, 1.0
  %v917 = vadd.f32 %v820, 1.0
  %v918 = vadd.f32 %v822, 1.0
  %v919 = vadd.f32 %v824, 1.0
  %v920 = vadd.f32 %v826, 1.0
  %v921 = vadd.f32 %v828, 1.0
  %v922 = vadd.f32 %v830, 1.0
  %v923 = vadd.f32 %v832, 1.0
  %v924 = vadd.f32 %v834, 1.0
  %v925 = vadd.f32 %v836, 1.0
  %v926 = vadd.f32 %v838, 1.0
  %v927 = vadd.f32 %v840, 1.0
  %v928 = vadd.f32 %v842, 1.0
  %v929 = vadd.f32 %v844, 1.0
  %v930 = vadd.f32 %v846, 1.0
  %v931 = vadd.f32 %v848, 1.0
  %v932 = vadd.f32 %v850, 1.0
  %v933 = vadd.f32 %v852, 1.0
  %v934 = vadd.f32 %v854, 1.0
  %v935 = vadd.f32 %v856, 1.0
  %v936 = vadd.f32 %v858, 1.0
  %v937 = vadd.f32 %v860, 1.0
  %v938 = vadd.f32 %v862, 1.0
  %v939 = vadd.f32 %v864, 1.0
  %v940 = vadd.f32 %v866, 1.0
  %v941 = vadd.f32 %v868, 1.0
  %v942 = vadd.f32 %v870, 1.0
  %v943 = vadd.f32 %v872, 1.0
  %v944 = vadd.f32 %v874, 1.0
  %v945 = vadd.f32 %v876, 1.0
  %v946 = vadd.f32 %v878, 1.0
  %v947 = vadd.f32 %v880, 1.0
  %v948 = vadd.f32 %v882, 1.0
  %v949 = vadd.f32 %v884, 1.0
  %v950 = vadd.f32 %v886, 1.0
  %v951 = vrcp.pop %v887
  %v952 = vmul.f32 1.0, %v951
  %v953 = vrcp.pop %v888
  %v954 = vmul.f32 1.0, %v953
  %v955 = vrcp.pop %v889
  %v956 = vmul.f32 1.0, %v955
  %v957 = vrcp.pop %v890
  %v958 = vmul.f32 1.0, %v957
  %v959 = vrcp.pop %v891
  %v960 = vmul.f32 1.0, %v959
  %v961 = vrcp.pop %v892
  %v962 = vmul.f32 1.0, %v961
  %v963 = vrcp.pop %v893
  %v964 = vmul.f32 1.0, %v963
  %v965 = vrcp.pop %v894
  %v966 = vmul.f32 1.0, %v965
  %v967 = vrcp.pop %v895
  %v968 = vmul.f32 1.0, %v967
  %v969 = vrcp.pop %v896
  %v970 = vmul.f32 1.0, %v969
  %v971 = vrcp.pop %v897
  %v972 = vmul.f32 1.0, %v971
  %v973 = vrcp.pop %v898
  %v974 = vmul.f32 1.0, %v973
  %v975 = vrcp.pop %v899
  %v976 = vmul.f32 1.0, %v975
  %v977 = vrcp.pop %v900
  %v978 = vmul.f32 1.0, %v977
  %v979 = vrcp.pop %v901
  %v980 = vmul.f32 1.0, %v979
  %v981 = vrcp.pop %v902
  %v982 = vmul.f32 1.0, %v981
  %v983 = vrcp.pop %v903
  %v984 = vmul.f32 1.0, %v983
  %v985 = vrcp.pop %v904
  %v986 = vmul.f32 1.0, %v985
  %v987 = vrcp.pop %v905
  %v988 = vmul.f32 1.0, %v987
  %v989 = vrcp.pop %v906
  %v990 = vmul.f32 1.0, %v989
  %v991 = vrcp.pop %v907
  %v992 = vmul.f32 1.0, %v991
  %v993 = vrcp.pop %v908
  %v994 = vmul.f32 1.0, %v993
  %v995 = vrcp.pop %v909
  %v996 = vmul.f32 1.0, %v995
  %v997 = vrcp.pop %v910
  %v998 = vmul.f32 1.0, %v997
  %v999 = vrcp.pop %v911
  %v1000 = vmul.f32 1.0, %v999
  %v1001 = vrcp.pop %v912
  %v1002 = vmul.f32 1.0, %v1001
  %v1003 = vrcp.pop %v913
  %v1004 = vmul.f32 1.0, %v1003
  %v1005 = vrcp.pop %v914
  %v1006 = vmul.f32 1.0, %v1005
  %v1007 = vrcp.pop %v915
  %v1008 = vmul.f32 1.0, %v1007
  %v1009 = vrcp.pop %v916
  %v1010 = vmul.f32 1.0, %v1009
  %v1011 = vrcp.pop %v917
  %v1012 = vmul.f32 1.0, %v1011
  %v1013 = vrcp.pop %v918
  %v1014 = vmul.f32 1.0, %v1013
  %v1015 = vrcp.pop %v919
  %v1016 = vmul.f32 1.0, %v1015
  %v1017 = vrcp.pop %v920
  %v1018 = vmul.f32 1.0, %v1017
  %v1019 = vrcp.pop %v921
  %v1020 = vmul.f32 1.0, %v1019
  %v1021 = vrcp.pop %v922
  %v1022 = vmul.f32 1.0, %v1021
  %v1023 = vrcp.pop %v923
  %v1024 = vmul.f32 1.0, %v1023
  %v1025 = vrcp.pop %v924
  %v1026 = vmul.f32 1.0, %v1025
  %v1027 = vrcp.pop %v925
  %v1028 = vmul.f32 1.0, %v1027
  %v1029 = vrcp.pop %v926
  %v1030 = vmul.f32 1.0, %v1029
  %v1031 = vrcp.pop %v927
  %v1032 = vmul.f32 1.0, %v1031
  %v1033 = vrcp.pop %v928
  %v1034 = vmul.f32 1.0, %v1033
  %v1035 = vrcp.pop %v929
  %v1036 = vmul.f32 1.0, %v1035
  %v1037 = vrcp.pop %v930
  %v1038 = vmul.f32 1.0, %v1037
  %v1039 = vrcp.pop %v931
  %v1040 = vmul.f32 1.0, %v1039
  %v1041 = vrcp.pop %v932
  %v1042 = vmul.f32 1.0, %v1041
  %v1043 = vrcp.pop %v933
  %v1044 = vmul.f32 1.0, %v1043
  %v1045 = vrcp.pop %v934
  %v1046 = vmul.f32 1.0, %v1045
  %v1047 = vrcp.pop %v935
  %v1048 = vmul.f32 1.0, %v1047
  %v1049 = vrcp.pop %v936
  %v1050 = vmul.f32 1.0, %v1049
  %v1051 = vrcp.pop %v937
  %v1052 = vmul.f32 1.0, %v1051
  %v1053 = vrcp.pop %v938
  %v1054 = vmul.f32 1.0, %v1053
  %v1055 = vrcp.pop %v939
  %v1056 = vmul.f32 1.0, %v1055
  %v1057 = vrcp.pop %v940
  %v1058 = vmul.f32 1.0, %v1057
  %v1059 = vrcp.pop %v941
  %v1060 = vmul.f32 1.0, %v1059
  %v1061 = vrcp.pop %v942
  %v1062 = vmul.f32 1.0, %v1061
  %v1063 = vrcp.pop %v943
  %v1064 = vmul.f32 1.0, %v1063
  %v1065 = vrcp.pop %v944
  %v1066 = vmul.f32 1.0, %v1065
  %v1067 = vrcp.pop %v945
  %v1068 = vmul.f32 1.0, %v1067
  %v1069 = vrcp.pop %v946
  %v1070 = vmul.f32 1.0, %v1069
  %v1071 = vrcp.pop %v947
  %v1072 = vmul.f32 1.0, %v1071
  %v1073 = vrcp.pop %v948
  %v1074 = vmul.f32 1.0, %v1073
  %v1075 = vrcp.pop %v949
  %v1076 = vmul.f32 1.0, %v1075
  %v1077 = vrcp.pop %v950
  %v1078 = vmul.f32 1.0, %v1077
  %v1079 = vmul.f32 %v344, %v952
  %v1080 = vmul.f32 %v346, %v954
  %v1081 = vmul.f32 %v348, %v956
  %v1082 = vmul.f32 %v350, %v958
  %v1083 = vmul.f32 %v354, %v960
  %v1084 = vmul.f32 %v356, %v962
  %v1085 = vmul.f32 %v358, %v964
  %v1086 = vmul.f32 %v360, %v966
  %v1087 = vmul.f32 %v364, %v968
  %v1088 = vmul.f32 %v366, %v970
  %v1089 = vmul.f32 %v368, %v972
  %v1090 = vmul.f32 %v370, %v974
  %v1091 = vmul.f32 %v374, %v976
  %v1092 = vmul.f32 %v376, %v978
  %v1093 = vmul.f32 %v378, %v980
  %v1094 = vmul.f32 %v380, %v982
  %v1095 = vmul.f32 %v384, %v984
  %v1096 = vmul.f32 %v386, %v986
  %v1097 = vmul.f32 %v388, %v988
  %v1098 = vmul.f32 %v390, %v990
  %v1099 = vmul.f32 %v394, %v992
  %v1100 = vmul.f32 %v396, %v994
  %v1101 = vmul.f32 %v398, %v996
  %v1102 = vmul.f32 %v400, %v998
  %v1103 = vmul.f32 %v404, %v1000
  %v1104 = vmul.f32 %v406, %v1002
  %v1105 = vmul.f32 %v408, %v1004
  %v1106 = vmul.f32 %v410, %v1006
  %v1107 = vmul.f32 %v414, %v1008
  %v1108 = vmul.f32 %v416, %v1010
  %v1109 = vmul.f32 %v418, %v1012
  %v1110 = vmul.f32 %v420, %v1014
  %v1111 = vmul.f32 %v424, %v1016
  %v1112 = vmul.f32 %v426, %v1018
  %v1113 = vmul.f32 %v428, %v1020
  %v1114 = vmul.f32 %v430, %v1022
  %v1115 = vmul.f32 %v434, %v1024
  %v1116 = vmul.f32 %v436, %v1026
  %v1117 = vmul.f32 %v438, %v1028
  %v1118 = vmul.f32 %v440, %v1030
  %v1119 = vmul.f32 %v444, %v1032
  %v1120 = vmul.f32 %v446, %v1034
  %v1121 = vmul.f32 %v448, %v1036
  %v1122 = vmul.f32 %v450, %v1038
  %v1123 = vmul.f32 %v454, %v1040
  %v1124 = vmul.f32 %v456, %v1042
  %v1125 = vmul.f32 %v458, %v1044
  %v1126 = vmul.f32 %v460, %v1046
  %v1127 = vmul.f32 %v464, %v1048
  %v1128 = vmul.f32 %v466, %v1050
  %v1129 = vmul.f32 %v468, %v1052
  %v1130 = vmul.f32 %v470, %v1054
  %v1131 = vmul.f32 %v474, %v1056
  %v1132 = vmul.f32 %v476, %v1058
  %v1133 = vmul.f32 %v478, %v1060
  %v1134 = vmul.f32 %v480, %v1062
  %v1135 = vmul.f32 %v484, %v1064
  %v1136 = vmul.f32 %v486, %v1066
  %v1137 = vmul.f32 %v488, %v1068
  %v1138 = vmul.f32 %v490, %v1070
  %v1139 = vmul.f32 %v494, %v1072
  %v1140 = vmul.f32 %v496, %v1074
  %v1141 = vmul.f32 %v498, %v1076
  %v1142 = vmul.f32 %v500, %v1078
  %v1143 = vmul.f32 %v1079, %v537
  %v1144 = vmul.f32 %v1080, %v539
  %v1145 = vmul.f32 %v1081, %v541
  %v1146 = vmul.f32 %v1082, %v543
  %v1147 = vmul.f32 %v1083, %v547
  %v1148 = vmul.f32 %v1084, %v549
  %v1149 = vmul.f32 %v1085, %v551
  %v1150 = vmul.f32 %v1086, %v553
  %v1151 = vmul.f32 %v1087, %v557
  %v1152 = vmul.f32 %v1088, %v559
  %v1153 = vmul.f32 %v1089, %v561
  %v1154 = vmul.f32 %v1090, %v563
  %v1155 = vmul.f32 %v1091, %v567
  %v1156 = vmul.f32 %v1092, %v569
  %v1157 = vmul.f32 %v1093, %v571
  %v1158 = vmul.f32 %v1094, %v573
  %v1159 = vmul.f32 %v1095, %v577
  %v1160 = vmul.f32 %v1096, %v579
  %v1161 = vmul.f32 %v1097, %v581
  %v1162 = vmul.f32 %v1098, %v583
  %v1163 = vmul.f32 %v1099, %v587
  %v1164 = vmul.f32 %v1100, %v589
  %v1165 = vmul.f32 %v1101, %v591
  %v1166 = vmul.f32 %v1102, %v593
  %v1167 = vmul.f32 %v1103, %v597
  %v1168 = vmul.f32 %v1104, %v599
  %v1169 = vmul.f32 %v1105, %v601
  %v1170 = vmul.f32 %v1106, %v603
  %v1171 = vmul.f32 %v1107, %v607
  %v1172 = vmul.f32 %v1108, %v609
  %v1173 = vmul.f32 %v1109, %v611
  %v1174 = vmul.f32 %v1110, %v613
  %v1175 = vmul.f32 %v1111, %v617
  %v1176 = vmul.f32 %v1112, %v619
  %v1177 = vmul.f32 %v1113, %v621
  %v1178 = vmul.f32 %v1114, %v623
  %v1179 = vmul.f32 %v1115, %v627
  %v1180 = vmul.f32 %v1116, %v629
  %v1181 = vmul.f32 %v1117, %v631
  %v1182 = vmul.f32 %v1118, %v633
  %v1183 = vmul.f32 %v1119, %v637
  %v1184 = vmul.f32 %v1120, %v639
  %v1185 = vmul.f32 %v1121, %v641
  %v1186 = vmul.f32 %v1122, %v643
  %v1187 = vmul.f32 %v1123, %v647
  %v1188 = vmul.f32 %v1124, %v649
  %v1189 = vmul.f32 %v1125, %v651
  %v1190 = vmul.f32 %v1126, %v653
  %v1191 = vmul.f32 %v1127, %v657
  %v1192 = vmul.f32 %v1128, %v659
  %v1193 = vmul.f32 %v1129, %v661
  %v1194 = vmul.f32 %v1130, %v663
  %v1195 = vmul.f32 %v1131, %v667
  %v1196 = vmul.f32 %v1132, %v669
  %v1197 = vmul.f32 %v1133, %v671
  %v1198 = vmul.f32 %v1134, %v673
  %v1199 = vmul.f32 %v1135, %v677
  %v1200 = vmul.f32 %v1136, %v679
  %v1201 = vmul.f32 %v1137, %v681
  %v1202 = vmul.f32 %v1138, %v683
  %v1203 = vmul.f32 %v1139, %v687
  %v1204 = vmul.f32 %v1140, %v689
  %v1205 = vmul.f32 %v1141, %v691
  %v1206 = vmul.f32 %v1142, %v693
  %v1207 = vld [vmem:[#allocation2] sm:$0xff]
  %v1208 = vld [vmem:[#allocation2 + $0x8] sm:$0xff]
  %v1209 = vld [vmem:[#allocation2 + $0x10] sm:$0xff]
  %v1210 = vld [vmem:[#allocation2 + $0x18] sm:$0xff]
  %v1211 = vld [vmem:[#allocation2 + $0x20] sm:$0xff]
  %v1212 = vld [vmem:[#allocation2 + $0x28] sm:$0xff]
  %v1213 = vld [vmem:[#allocation2 + $0x30] sm:$0xff]
  %v1214 = vld [vmem:[#allocation2 + $0x38] sm:$0xff]
  %v1215 = vld [vmem:[#allocation2 + $0x40] sm:$0xff]
  %v1216 = vld [vmem:[#allocation2 + $0x48] sm:$0xff]
  %v1217 = vld [vmem:[#allocation2 + $0x50] sm:$0xff]
  %v1218 = vld [vmem:[#allocation2 + $0x58] sm:$0xff]
  %v1219 = vld [vmem:[#allocation2 + $0x60] sm:$0xff]
  %v1220 = vld [vmem:[#allocation2 + $0x68] sm:$0xff]
  %v1221 = vld [vmem:[#allocation2 + $0x70] sm:$0xff]
  %v1222 = vld [vmem:[#allocation2 + $0x78] sm:$0xff]
  %v1223 = vld [vmem:[#allocation2 + $0x80] sm:$0xff]
  %v1224 = vld [vmem:[#allocation2 + $0x88] sm:$0xff]
  %v1225 = vld [vmem:[#allocation2 + $0x90] sm:$0xff]
  %v1226 = vld [vmem:[#allocation2 + $0x98] sm:$0xff]
  %v1227 = vld [vmem:[#allocation2 + $0xa0] sm:$0xff]
  %v1228 = vld [vmem:[#allocation2 + $0xa8] sm:$0xff]
  %v1229 = vld [vmem:[#allocation2 + $0xb0] sm:$0xff]
  %v1230 = vld [vmem:[#allocation2 + $0xb8] sm:$0xff]
  %v1231 = vld [vmem:[#allocation2 + $0xc0] sm:$0xff]
  %v1232 = vld [vmem:[#allocation2 + $0xc8] sm:$0xff]
  %v1233 = vld [vmem:[#allocation2 + $0xd0] sm:$0xff]
  %v1234 = vld [vmem:[#allocation2 + $0xd8] sm:$0xff]
  %v1235 = vld [vmem:[#allocation2 + $0xe0] sm:$0xff]
  %v1236 = vld [vmem:[#allocation2 + $0xe8] sm:$0xff]
  %v1237 = vld [vmem:[#allocation2 + $0xf0] sm:$0xff]
  %v1238 = vld [vmem:[#allocation2 + $0xf8] sm:$0xff]
  %v1239 = vpack.c.bf16 %v1145, %v1143
  %v1240 = vpack.c.bf16 %v1146, %v1144
  %v1241 = vpack.c.bf16 %v1149, %v1147
  %v1242 = vpack.c.bf16 %v1150, %v1148
  %v1243 = vpack.c.bf16 %v1153, %v1151
  %v1244 = vpack.c.bf16 %v1154, %v1152
  %v1245 = vpack.c.bf16 %v1157, %v1155
  %v1246 = vpack.c.bf16 %v1158, %v1156
  %v1247 = vpack.c.bf16 %v1161, %v1159
  %v1248 = vpack.c.bf16 %v1162, %v1160
  %v1249 = vpack.c.bf16 %v1165, %v1163
  %v1250 = vpack.c.bf16 %v1166, %v1164
  %v1251 = vpack.c.bf16 %v1169, %v1167
  %v1252 = vpack.c.bf16 %v1170, %v1168
  %v1253 = vpack.c.bf16 %v1173, %v1171
  %v1254 = vpack.c.bf16 %v1174, %v1172
  %v1255 = vpack.c.bf16 %v1177, %v1175
  %v1256 = vpack.c.bf16 %v1178, %v1176
  %v1257 = vpack.c.bf16 %v1181, %v1179
  %v1258 = vpack.c.bf16 %v1182, %v1180
  %v1259 = vpack.c.bf16 %v1185, %v1183
  %v1260 = vpack.c.bf16 %v1186, %v1184
  %v1261 = vpack.c.bf16 %v1189, %v1187
  %v1262 = vpack.c.bf16 %v1190, %v1188
  %v1263 = vpack.c.bf16 %v1193, %v1191
  %v1264 = vpack.c.bf16 %v1194, %v1192
  %v1265 = vpack.c.bf16 %v1197, %v1195
  %v1266 = vpack.c.bf16 %v1198, %v1196
  %v1267 = vpack.c.bf16 %v1201, %v1199
  %v1268 = vpack.c.bf16 %v1202, %v1200
  %v1269 = vpack.c.bf16 %v1205, %v1203
  %v1270 = vpack.c.bf16 %v1206, %v1204
  %v1271 = vld [vmem:[%s2] sm:$0xf]
  %v1272 = vld [vmem:[%s2 + $0x4] sm:$0xf]
  %v1273 = vld [vmem:[%s2 + $0x8] sm:$0xf]
  %v1274 = vld [vmem:[%s2 + $0xc] sm:$0xf]
  %v1275 = vld [vmem:[%s2 + $0x10] sm:$0xf]
  %v1276 = vld [vmem:[%s2 + $0x14] sm:$0xf]
  %v1277 = vld [vmem:[%s2 + $0x18] sm:$0xf]
  %v1278 = vld [vmem:[%s2 + $0x1c] sm:$0xf]
  %v1279 = vld [vmem:[%s2 + $0x20] sm:$0xf]
  %v1280 = vld [vmem:[%s2 + $0x24] sm:$0xf]
  %v1281 = vld [vmem:[%s2 + $0x28] sm:$0xf]
  %v1282 = vld [vmem:[%s2 + $0x2c] sm:$0xf]
  %v1283 = vld [vmem:[%s2 + $0x30] sm:$0xf]
  %v1284 = vld [vmem:[%s2 + $0x34] sm:$0xf]
  %v1285 = vld [vmem:[%s2 + $0x38] sm:$0xf]
  %v1286 = vld [vmem:[%s2 + $0x3c] sm:$0xf]
  %v1287 = vld [vmem:[%s2 + $0x40] sm:$0xf]
  %v1288 = vld [vmem:[%s2 + $0x44] sm:$0xf]
  %v1289 = vld [vmem:[%s2 + $0x48] sm:$0xf]
  %v1290 = vld [vmem:[%s2 + $0x4c] sm:$0xf]
  %v1291 = vld [vmem:[%s2 + $0x50] sm:$0xf]
  %v1292 = vld [vmem:[%s2 + $0x54] sm:$0xf]
  %v1293 = vld [vmem:[%s2 + $0x58] sm:$0xf]
  %v1294 = vld [vmem:[%s2 + $0x5c] sm:$0xf]
  %v1295 = vld [vmem:[%s2 + $0x60] sm:$0xf]
  %v1296 = vld [vmem:[%s2 + $0x64] sm:$0xf]
  %v1297 = vld [vmem:[%s2 + $0x68] sm:$0xf]
  %v1298 = vld [vmem:[%s2 + $0x6c] sm:$0xf]
  %v1299 = vld [vmem:[%s2 + $0x70] sm:$0xf]
  %v1300 = vld [vmem:[%s2 + $0x74] sm:$0xf]
  %v1301 = vld [vmem:[%s2 + $0x78] sm:$0xf]
  %v1302 = vld [vmem:[%s2 + $0x7c] sm:$0xf]
  %v1335 = vunpack.c.l.b16 %v1271
  %v1336 = vunpack.c.l.b16 %v1272
  %v1337 = vunpack.c.l.b16 %v1273
  %v1338 = vunpack.c.l.b16 %v1274
  %v1339 = vunpack.c.l.b16 %v1275
  %v1340 = vunpack.c.l.b16 %v1276
  %v1341 = vunpack.c.l.b16 %v1277
  %v1342 = vunpack.c.l.b16 %v1278
  %v1343 = vunpack.c.l.b16 %v1279
  %v1344 = vunpack.c.l.b16 %v1280
  %v1345 = vunpack.c.l.b16 %v1281
  %v1346 = vunpack.c.l.b16 %v1282
  %v1347 = vunpack.c.l.b16 %v1283
  %v1348 = vunpack.c.l.b16 %v1284
  %v1349 = vunpack.c.l.b16 %v1285
  %v1350 = vunpack.c.l.b16 %v1286
  %v1351 = vunpack.c.l.b16 %v1287
  %v1352 = vunpack.c.l.b16 %v1288
  %v1353 = vunpack.c.l.b16 %v1289
  %v1354 = vunpack.c.l.b16 %v1290
  %v1355 = vunpack.c.l.b16 %v1291
  %v1356 = vunpack.c.l.b16 %v1292
  %v1357 = vunpack.c.l.b16 %v1293
  %v1358 = vunpack.c.l.b16 %v1294
  %v1359 = vunpack.c.l.b16 %v1295
  %v1360 = vunpack.c.l.b16 %v1296
  %v1361 = vunpack.c.l.b16 %v1297
  %v1362 = vunpack.c.l.b16 %v1298
  %v1363 = vunpack.c.l.b16 %v1299
  %v1364 = vunpack.c.l.b16 %v1300
  %v1365 = vunpack.c.l.b16 %v1301
  %v1366 = vunpack.c.l.b16 %v1302
  %v1367 = vpack.c.b16 %v1336, %v1335
  %v1368 = vpack.c.b16 %v1338, %v1337
  %v1369 = vpack.c.b16 %v1340, %v1339
  %v1370 = vpack.c.b16 %v1342, %v1341
  %v1371 = vpack.c.b16 %v1344, %v1343
  %v1372 = vpack.c.b16 %v1346, %v1345
  %v1373 = vpack.c.b16 %v1348, %v1347
  %v1374 = vpack.c.b16 %v1350, %v1349
  %v1375 = vpack.c.b16 %v1352, %v1351
  %v1376 = vpack.c.b16 %v1354, %v1353
  %v1377 = vpack.c.b16 %v1356, %v1355
  %v1378 = vpack.c.b16 %v1358, %v1357
  %v1379 = vpack.c.b16 %v1360, %v1359
  %v1380 = vpack.c.b16 %v1362, %v1361
  %v1381 = vpack.c.b16 %v1364, %v1363
  %v1382 = vpack.c.b16 %v1366, %v1365
  %1399 = vmatprep.subr.bf16.mxu0 0
  %1400 = vmatpush1.bf16.msra.mxu0 %v1367
  %1401 = vmatprep.subr.bf16.mxu0 0
  %1402 = vmatpush1.bf16.msra.mxu0 %v1368
  %1403 = vmatprep.subr.bf16.mxu0 0
  %1404 = vmatpush1.bf16.msra.mxu0 %v1369
  %1405 = vmatprep.subr.bf16.mxu0 0
  %1406 = vmatpush1.bf16.msra.mxu0 %v1370
  %1407 = vmatprep.subr.bf16.mxu0 0
  %1408 = vmatpush1.bf16.msra.mxu0 %v1371
  %1409 = vmatprep.subr.bf16.mxu0 0
  %1410 = vmatpush1.bf16.msra.mxu0 %v1372
  %1411 = vmatprep.subr.bf16.mxu0 0
  %1412 = vmatpush1.bf16.msra.mxu0 %v1373
  %1413 = vmatprep.subr.bf16.mxu0 0
  %1414 = vmatpush1.bf16.msra.mxu0 %v1374
  %1415 = vmatprep.subr.bf16.mxu0 0
  %1416 = vmatpush1.bf16.msra.mxu0 %v1375
  %1417 = vmatprep.subr.bf16.mxu0 0
  %1418 = vmatpush1.bf16.msra.mxu0 %v1376
  %1419 = vmatprep.subr.bf16.mxu0 0
  %1420 = vmatpush1.bf16.msra.mxu0 %v1377
  %1421 = vmatprep.subr.bf16.mxu0 0
  %1422 = vmatpush1.bf16.msra.mxu0 %v1378
  %1423 = vmatprep.subr.bf16.mxu0 0
  %1424 = vmatpush1.bf16.msra.mxu0 %v1379
  %1425 = vmatprep.subr.bf16.mxu0 0
  %1426 = vmatpush1.bf16.msra.mxu0 %v1380
  %1427 = vmatprep.subr.bf16.mxu0 0
  %1428 = vmatpush1.bf16.msra.mxu0 %v1381
  %1429 = vmatprep.subr.bf16.mxu0 0
  %1430 = vmatpush1.bf16.msra.mxu0 %v1382
  %1431 = vmatprep.mubr.bf16.mxu0 %v1240
  %1432 = vmatmul.mubr.bf16.gmra.mrb[0].mxu0 %v1239
  %v1433 = vpop.f32.mrb[0].mxu0
  %v1434 = vadd.f32 0.0, %v1433
  %v1435 = vpop.f32.mrb[0].mxu0
  %v1436 = vpop.f32.mrb[0].mxu0
  %v1437 = vadd.f32 0.0, %v1436
  %v1438 = vpop.f32.mrb[0].mxu0
  %1439 = vmatprep.mubr.bf16.mxu0 %v1242
  %1440 = vmatmul.mubr.bf16.gmra.mrb[0].mxu0 %v1241
  %v1441 = vpop.f32.mrb[0].mxu0
  %v1442 = vadd.f32 0.0, %v1441
  %v1443 = vpop.f32.mrb[0].mxu0
  %v1444 = vpop.f32.mrb[0].mxu0
  %v1445 = vadd.f32 0.0, %v1444
  %v1446 = vpop.f32.mrb[0].mxu0
  %1447 = vmatprep.mubr.bf16.mxu0 %v1244
  %1448 = vmatmul.mubr.bf16.gmra.mrb[0].mxu0 %v1243
  %v1449 = vpop.f32.mrb[0].mxu0
  %v1450 = vadd.f32 0.0, %v1449
  %v1451 = vpop.f32.mrb[0].mxu0
  %v1452 = vpop.f32.mrb[0].mxu0
  %v1453 = vadd.f32 0.0, %v1452
  %v1454 = vpop.f32.mrb[0].mxu0
  %1455 = vmatprep.mubr.bf16.mxu0 %v1246
  %1456 = vmatmul.mubr.bf16.gmra.mrb[0].mxu0 %v1245
  %v1457 = vpop.f32.mrb[0].mxu0
  %v1458 = vadd.f32 0.0, %v1457
  %v1459 = vpop.f32.mrb[0].mxu0
  %v1460 = vpop.f32.mrb[0].mxu0
  %v1461 = vadd.f32 0.0, %v1460
  %v1462 = vpop.f32.mrb[0].mxu0
  %1463 = vmatprep.mubr.bf16.mxu0 %v1248
  %1464 = vmatmul.mubr.bf16.gmra.mrb[0].mxu0 %v1247
  %v1465 = vpop.f32.mrb[0].mxu0
  %v1466 = vadd.f32 0.0, %v1465
  %v1467 = vpop.f32.mrb[0].mxu0
  %v1468 = vpop.f32.mrb[0].mxu0
  %v1469 = vadd.f32 0.0, %v1468
  %v1470 = vpop.f32.mrb[0].mxu0
  %1471 = vmatprep.mubr.bf16.mxu0 %v1250
  %1472 = vmatmul.mubr.bf16.gmra.mrb[0].mxu0 %v1249
  %v1473 = vpop.f32.mrb[0].mxu0
  %v1474 = vadd.f32 0.0, %v1473
  %v1475 = vpop.f32.mrb[0].mxu0
  %v1476 = vpop.f32.mrb[0].mxu0
  %v1477 = vadd.f32 0.0, %v1476
  %v1478 = vpop.f32.mrb[0].mxu0
  %1479 = vmatprep.mubr.bf16.mxu0 %v1252
  %1480 = vmatmul.mubr.bf16.gmra.mrb[0].mxu0 %v1251
  %v1481 = vpop.f32.mrb[0].mxu0
  %v1482 = vadd.f32 0.0, %v1481
  %v1483 = vpop.f32.mrb[0].mxu0
  %v1484 = vpop.f32.mrb[0].mxu0
  %v1485 = vadd.f32 0.0, %v1484
  %v1486 = vpop.f32.mrb[0].mxu0
  %1487 = vmatprep.mubr.bf16.mxu0 %v1254
  %1488 = vmatmul.mubr.bf16.gmra.mrb[0].mxu0 %v1253
  %v1489 = vpop.f32.mrb[0].mxu0
  %v1490 = vadd.f32 0.0, %v1489
  %v1491 = vpop.f32.mrb[0].mxu0
  %v1492 = vpop.f32.mrb[0].mxu0
  %v1493 = vadd.f32 0.0, %v1492
  %v1494 = vpop.f32.mrb[0].mxu0
  %1495 = vmatprep.mubr.bf16.mxu0 %v1256
  %1496 = vmatmul.mubr.bf16.gmra.mrb[0].mxu0 %v1255
  %v1497 = vpop.f32.mrb[0].mxu0
  %v1498 = vadd.f32 0.0, %v1497
  %v1499 = vpop.f32.mrb[0].mxu0
  %v1500 = vpop.f32.mrb[0].mxu0
  %v1501 = vadd.f32 0.0, %v1500
  %v1502 = vpop.f32.mrb[0].mxu0
  %1503 = vmatprep.mubr.bf16.mxu0 %v1258
  %1504 = vmatmul.mubr.bf16.gmra.mrb[0].mxu0 %v1257
  %v1505 = vpop.f32.mrb[0].mxu0
  %v1506 = vadd.f32 0.0, %v1505
  %v1507 = vpop.f32.mrb[0].mxu0
  %v1508 = vpop.f32.mrb[0].mxu0
  %v1509 = vadd.f32 0.0, %v1508
  %v1510 = vpop.f32.mrb[0].mxu0
  %1511 = vmatprep.mubr.bf16.mxu0 %v1260
  %1512 = vmatmul.mubr.bf16.gmra.mrb[0].mxu0 %v1259
  %v1513 = vpop.f32.mrb[0].mxu0
  %v1514 = vadd.f32 0.0, %v1513
  %v1515 = vpop.f32.mrb[0].mxu0
  %v1516 = vpop.f32.mrb[0].mxu0
  %v1517 = vadd.f32 0.0, %v1516
  %v1518 = vpop.f32.mrb[0].mxu0
  %1519 = vmatprep.mubr.bf16.mxu0 %v1262
  %1520 = vmatmul.mubr.bf16.gmra.mrb[0].mxu0 %v1261
  %v1521 = vpop.f32.mrb[0].mxu0
  %v1522 = vadd.f32 0.0, %v1521
  %v1523 = vpop.f32.mrb[0].mxu0
  %v1524 = vpop.f32.mrb[0].mxu0
  %v1525 = vadd.f32 0.0, %v1524
  %v1526 = vpop.f32.mrb[0].mxu0
  %1527 = vmatprep.mubr.bf16.mxu0 %v1264
  %1528 = vmatmul.mubr.bf16.gmra.mrb[0].mxu0 %v1263
  %v1529 = vpop.f32.mrb[0].mxu0
  %v1530 = vadd.f32 0.0, %v1529
  %v1531 = vpop.f32.mrb[0].mxu0
  %v1532 = vpop.f32.mrb[0].mxu0
  %v1533 = vadd.f32 0.0, %v1532
  %v1534 = vpop.f32.mrb[0].mxu0
  %1535 = vmatprep.mubr.bf16.mxu0 %v1266
  %1536 = vmatmul.mubr.bf16.gmra.mrb[0].mxu0 %v1265
  %v1537 = vpop.f32.mrb[0].mxu0
  %v1538 = vadd.f32 0.0, %v1537
  %v1539 = vpop.f32.mrb[0].mxu0
  %v1540 = vpop.f32.mrb[0].mxu0
  %v1541 = vadd.f32 0.0, %v1540
  %v1542 = vpop.f32.mrb[0].mxu0
  %1543 = vmatprep.mubr.bf16.mxu0 %v1268
  %1544 = vmatmul.mubr.bf16.gmra.mrb[0].mxu0 %v1267
  %v1545 = vpop.f32.mrb[0].mxu0
  %v1546 = vadd.f32 0.0, %v1545
  %v1547 = vpop.f32.mrb[0].mxu0
  %v1548 = vpop.f32.mrb[0].mxu0
  %v1549 = vadd.f32 0.0, %v1548
  %v1550 = vpop.f32.mrb[0].mxu0
  %1551 = vmatprep.mubr.bf16.mxu0 %v1270
  %1552 = vmatmul.mubr.bf16.gmra.mrb[0].mxu0 %v1269
  %v1553 = vpop.f32.mrb[0].mxu0
  %v1554 = vadd.f32 0.0, %v1553
  %v1555 = vpop.f32.mrb[0].mxu0
  %v1556 = vpop.f32.mrb[0].mxu0
  %v1557 = vadd.f32 0.0, %v1556
  %v1558 = vpop.f32.mrb[0].mxu0
  %1559 = vdwg.mxu0
  %v1560 = vadd.f32 %v1207, %v1434
  %v1561 = vadd.f32 %v1208, %v1437
  %v1562 = vadd.f32 %v1209, %v1442
  %v1563 = vadd.f32 %v1210, %v1445
  %v1564 = vadd.f32 %v1211, %v1450
  %v1565 = vadd.f32 %v1212, %v1453
  %v1566 = vadd.f32 %v1213, %v1458
  %v1567 = vadd.f32 %v1214, %v1461
  %v1568 = vadd.f32 %v1215, %v1466
  %v1569 = vadd.f32 %v1216, %v1469
  %v1570 = vadd.f32 %v1217, %v1474
  %v1571 = vadd.f32 %v1218, %v1477
  %v1572 = vadd.f32 %v1219, %v1482
  %v1573 = vadd.f32 %v1220, %v1485
  %v1574 = vadd.f32 %v1221, %v1490
  %v1575 = vadd.f32 %v1222, %v1493
  %v1576 = vadd.f32 %v1223, %v1498
  %v1577 = vadd.f32 %v1224, %v1501
  %v1578 = vadd.f32 %v1225, %v1506
  %v1579 = vadd.f32 %v1226, %v1509
  %v1580 = vadd.f32 %v1227, %v1514
  %v1581 = vadd.f32 %v1228, %v1517
  %v1582 = vadd.f32 %v1229, %v1522
  %v1583 = vadd.f32 %v1230, %v1525
  %v1584 = vadd.f32 %v1231, %v1530
  %v1585 = vadd.f32 %v1232, %v1533
  %v1586 = vadd.f32 %v1233, %v1538
  %v1587 = vadd.f32 %v1234, %v1541
  %v1588 = vadd.f32 %v1235, %v1546
  %v1589 = vadd.f32 %v1236, %v1549
  %v1590 = vadd.f32 %v1237, %v1554
  %v1591 = vadd.f32 %v1238, %v1557
  %1592 = vst.msk [vmem:[#allocation2] sm:$0xff] %vm260, %v1560
  %1593 = vst.msk [vmem:[#allocation2 + $0x8] sm:$0xff] %vm260, %v1561
  %1594 = vst.msk [vmem:[#allocation2 + $0x10] sm:$0xff] %vm260, %v1562
  %1595 = vst.msk [vmem:[#allocation2 + $0x18] sm:$0xff] %vm260, %v1563
  %1596 = vst.msk [vmem:[#allocation2 + $0x20] sm:$0xff] %vm260, %v1564
  %1597 = vst.msk [vmem:[#allocation2 + $0x28] sm:$0xff] %vm260, %v1565
  %1598 = vst.msk [vmem:[#allocation2 + $0x30] sm:$0xff] %vm260, %v1566
  %1599 = vst.msk [vmem:[#allocation2 + $0x38] sm:$0xff] %vm260, %v1567
  %1600 = vst.msk [vmem:[#allocation2 + $0x40] sm:$0xff] %vm260, %v1568
  %1601 = vst.msk [vmem:[#allocation2 + $0x48] sm:$0xff] %vm260, %v1569
  %1602 = vst.msk [vmem:[#allocation2 + $0x50] sm:$0xff] %vm260, %v1570
  %1603 = vst.msk [vmem:[#allocation2 + $0x58] sm:$0xff] %vm260, %v1571
  %1604 = vst.msk [vmem:[#allocation2 + $0x60] sm:$0xff] %vm260, %v1572
  %1605 = vst.msk [vmem:[#allocation2 + $0x68] sm:$0xff] %vm260, %v1573
  %1606 = vst.msk [vmem:[#allocation2 + $0x70] sm:$0xff] %vm260, %v1574
  %1607 = vst.msk [vmem:[#allocation2 + $0x78] sm:$0xff] %vm260, %v1575
  %1608 = vst.msk [vmem:[#allocation2 + $0x80] sm:$0xff] %vm260, %v1576
  %1609 = vst.msk [vmem:[#allocation2 + $0x88] sm:$0xff] %vm260, %v1577
  %1610 = vst.msk [vmem:[#allocation2 + $0x90] sm:$0xff] %vm260, %v1578
  %1611 = vst.msk [vmem:[#allocation2 + $0x98] sm:$0xff] %vm260, %v1579
  %1612 = vst.msk [vmem:[#allocation2 + $0xa0] sm:$0xff] %vm260, %v1580
  %1613 = vst.msk [vmem:[#allocation2 + $0xa8] sm:$0xff] %vm260, %v1581
  %1614 = vst.msk [vmem:[#allocation2 + $0xb0] sm:$0xff] %vm260, %v1582
  %1615 = vst.msk [vmem:[#allocation2 + $0xb8] sm:$0xff] %vm260, %v1583
  %1616 = vst.msk [vmem:[#allocation2 + $0xc0] sm:$0xff] %vm260, %v1584
  %1617 = vst.msk [vmem:[#allocation2 + $0xc8] sm:$0xff] %vm260, %v1585
  %1618 = vst.msk [vmem:[#allocation2 + $0xd0] sm:$0xff] %vm260, %v1586
  %1619 = vst.msk [vmem:[#allocation2 + $0xd8] sm:$0xff] %vm260, %v1587
  %1620 = vst.msk [vmem:[#allocation2 + $0xe0] sm:$0xff] %vm260, %v1588
  %1621 = vst.msk [vmem:[#allocation2 + $0xe8] sm:$0xff] %vm260, %v1589
  %1622 = vst.msk [vmem:[#allocation2 + $0xf0] sm:$0xff] %vm260, %v1590
  %1623 = vst.msk [vmem:[#allocation2 + $0xf8] sm:$0xff] %vm260, %v1591
  // Predicated region
  $region18: #{feed_forward.1} parent=0 // pred_check
    %p1624 = pneg %p15
  $region19: #{feed_forward.1} parent=0 // pred_check_branch
    %1626 = sbr.rel (%p1624) target = $region21
  $region20: #{feed_forward.1} parent=0 // pred_region
    %v1627 = vld [vmem:[#allocation2] sm:$0xff]
    %v1628 = vld [vmem:[#allocation2 + $0x8] sm:$0xff]
    %v1629 = vld [vmem:[#allocation2 + $0x10] sm:$0xff]
    %v1630 = vld [vmem:[#allocation2 + $0x18] sm:$0xff]
    %v1631 = vld [vmem:[#allocation2 + $0x20] sm:$0xff]
    %v1632 = vld [vmem:[#allocation2 + $0x28] sm:$0xff]
    %v1633 = vld [vmem:[#allocation2 + $0x30] sm:$0xff]
    %v1634 = vld [vmem:[#allocation2 + $0x38] sm:$0xff]
    %v1635 = vld [vmem:[#allocation2 + $0x40] sm:$0xff]
    %v1636 = vld [vmem:[#allocation2 + $0x48] sm:$0xff]
    %v1637 = vld [vmem:[#allocation2 + $0x50] sm:$0xff]
    %v1638 = vld [vmem:[#allocation2 + $0x58] sm:$0xff]
    %v1639 = vld [vmem:[#allocation2 + $0x60] sm:$0xff]
    %v1640 = vld [vmem:[#allocation2 + $0x68] sm:$0xff]
    %v1641 = vld [vmem:[#allocation2 + $0x70] sm:$0xff]
    %v1642 = vld [vmem:[#allocation2 + $0x78] sm:$0xff]
    %v1643 = vld [vmem:[#allocation2 + $0x80] sm:$0xff]
    %v1644 = vld [vmem:[#allocation2 + $0x88] sm:$0xff]
    %v1645 = vld [vmem:[#allocation2 + $0x90] sm:$0xff]
    %v1646 = vld [vmem:[#allocation2 + $0x98] sm:$0xff]
    %v1647 = vld [vmem:[#allocation2 + $0xa0] sm:$0xff]
    %v1648 = vld [vmem:[#allocation2 + $0xa8] sm:$0xff]
    %v1649 = vld [vmem:[#allocation2 + $0xb0] sm:$0xff]
    %v1650 = vld [vmem:[#allocation2 + $0xb8] sm:$0xff]
    %v1651 = vld [vmem:[#allocation2 + $0xc0] sm:$0xff]
    %v1652 = vld [vmem:[#allocation2 + $0xc8] sm:$0xff]
    %v1653 = vld [vmem:[#allocation2 + $0xd0] sm:$0xff]
    %v1654 = vld [vmem:[#allocation2 + $0xd8] sm:$0xff]
    %v1655 = vld [vmem:[#allocation2 + $0xe0] sm:$0xff]
    %v1656 = vld [vmem:[#allocation2 + $0xe8] sm:$0xff]
    %v1657 = vld [vmem:[#allocation2 + $0xf0] sm:$0xff]
    %v1658 = vld [vmem:[#allocation2 + $0xf8] sm:$0xff]
    %v1659 = vpack.c.bf16 %v1628, %v1627
    %v1660 = vpack.c.bf16 %v1630, %v1629
    %v1661 = vpack.c.bf16 %v1632, %v1631
    %v1662 = vpack.c.bf16 %v1634, %v1633
    %v1663 = vpack.c.bf16 %v1636, %v1635
    %v1664 = vpack.c.bf16 %v1638, %v1637
    %v1665 = vpack.c.bf16 %v1640, %v1639
    %v1666 = vpack.c.bf16 %v1642, %v1641
    %v1667 = vpack.c.bf16 %v1644, %v1643
    %v1668 = vpack.c.bf16 %v1646, %v1645
    %v1669 = vpack.c.bf16 %v1648, %v1647
    %v1670 = vpack.c.bf16 %v1650, %v1649
    %v1671 = vpack.c.bf16 %v1652, %v1651
    %v1672 = vpack.c.bf16 %v1654, %v1653
    %v1673 = vpack.c.bf16 %v1656, %v1655
    %v1674 = vpack.c.bf16 %v1658, %v1657
    %v1691 = vunpack.c.l.b16 %v1659
    %v1692 = vunpack.c.h.b16 %v1659
    %v1693 = vunpack.c.l.b16 %v1660
    %v1694 = vunpack.c.h.b16 %v1660
    %v1695 = vunpack.c.l.b16 %v1661
    %v1696 = vunpack.c.h.b16 %v1661
    %v1697 = vunpack.c.l.b16 %v1662
    %v1698 = vunpack.c.h.b16 %v1662
    %v1699 = vunpack.c.l.b16 %v1663
    %v1700 = vunpack.c.h.b16 %v1663
    %v1701 = vunpack.c.l.b16 %v1664
    %v1702 = vunpack.c.h.b16 %v1664
    %v1703 = vunpack.c.l.b16 %v1665
    %v1704 = vunpack.c.h.b16 %v1665
    %v1705 = vunpack.c.l.b16 %v1666
    %v1706 = vunpack.c.h.b16 %v1666
    %v1707 = vunpack.c.l.b16 %v1667
    %v1708 = vunpack.c.h.b16 %v1667
    %v1709 = vunpack.c.l.b16 %v1668
    %v1710 = vunpack.c.h.b16 %v1668
    %v1711 = vunpack.c.l.b16 %v1669
    %v1712 = vunpack.c.h.b16 %v1669
    %v1713 = vunpack.c.l.b16 %v1670
    %v1714 = vunpack.c.h.b16 %v1670
    %v1715 = vunpack.c.l.b16 %v1671
    %v1716 = vunpack.c.h.b16 %v1671
    %v1717 = vunpack.c.l.b16 %v1672
    %v1718 = vunpack.c.h.b16 %v1672
    %v1719 = vunpack.c.l.b16 %v1673
    %v1720 = vunpack.c.h.b16 %v1673
    %v1721 = vunpack.c.l.b16 %v1674
    %v1722 = vunpack.c.h.b16 %v1674
    %v1723 = vpack.c.b16 %v1691, %v1691
    %v1724 = vpack.c.b16 %v1692, %v1692
    %v1725 = vpack.c.b16 %v1693, %v1693
    %v1726 = vpack.c.b16 %v1694, %v1694
    %v1727 = vpack.c.b16 %v1695, %v1695
    %v1728 = vpack.c.b16 %v1696, %v1696
    %v1729 = vpack.c.b16 %v1697, %v1697
    %v1730 = vpack.c.b16 %v1698, %v1698
    %v1731 = vpack.c.b16 %v1699, %v1699
    %v1732 = vpack.c.b16 %v1700, %v1700
    %v1733 = vpack.c.b16 %v1701, %v1701
    %v1734 = vpack.c.b16 %v1702, %v1702
    %v1735 = vpack.c.b16 %v1703, %v1703
    %v1736 = vpack.c.b16 %v1704, %v1704
    %v1737 = vpack.c.b16 %v1705, %v1705
    %v1738 = vpack.c.b16 %v1706, %v1706
    %v1739 = vpack.c.b16 %v1707, %v1707
    %v1740 = vpack.c.b16 %v1708, %v1708
    %v1741 = vpack.c.b16 %v1709, %v1709
    %v1742 = vpack.c.b16 %v1710, %v1710
    %v1743 = vpack.c.b16 %v1711, %v1711
    %v1744 = vpack.c.b16 %v1712, %v1712
    %v1745 = vpack.c.b16 %v1713, %v1713
    %v1746 = vpack.c.b16 %v1714, %v1714
    %v1747 = vpack.c.b16 %v1715, %v1715
    %v1748 = vpack.c.b16 %v1716, %v1716
    %v1749 = vpack.c.b16 %v1717, %v1717
    %v1750 = vpack.c.b16 %v1718, %v1718
    %v1751 = vpack.c.b16 %v1719, %v1719
    %v1752 = vpack.c.b16 %v1720, %v1720
    %v1753 = vpack.c.b16 %v1721, %v1721
    %v1754 = vpack.c.b16 %v1722, %v1722
    %vm1787 = vcmask 519168
    %1788 = vst.msk [vmem:[%s3] sm:$0xf] %vm1787, %v1723
    %1789 = vst.msk [vmem:[%s3 + $0x4] sm:$0xf] %vm1787, %v1724
    %1790 = vst.msk [vmem:[%s3 + $0x8] sm:$0xf] %vm1787, %v1725
    %1791 = vst.msk [vmem:[%s3 + $0xc] sm:$0xf] %vm1787, %v1726
    %1792 = vst.msk [vmem:[%s3 + $0x10] sm:$0xf] %vm1787, %v1727
    %1793 = vst.msk [vmem:[%s3 + $0x14] sm:$0xf] %vm1787, %v1728
    %1794 = vst.msk [vmem:[%s3 + $0x18] sm:$0xf] %vm1787, %v1729
    %1795 = vst.msk [vmem:[%s3 + $0x1c] sm:$0xf] %vm1787, %v1730
    %1796 = vst.msk [vmem:[%s3 + $0x20] sm:$0xf] %vm1787, %v1731
    %1797 = vst.msk [vmem:[%s3 + $0x24] sm:$0xf] %vm1787, %v1732
    %1798 = vst.msk [vmem:[%s3 + $0x28] sm:$0xf] %vm1787, %v1733
    %1799 = vst.msk [vmem:[%s3 + $0x2c] sm:$0xf] %vm1787, %v1734
    %1800 = vst.msk [vmem:[%s3 + $0x30] sm:$0xf] %vm1787, %v1735
    %1801 = vst.msk [vmem:[%s3 + $0x34] sm:$0xf] %vm1787, %v1736
    %1802 = vst.msk [vmem:[%s3 + $0x38] sm:$0xf] %vm1787, %v1737
    %1803 = vst.msk [vmem:[%s3 + $0x3c] sm:$0xf] %vm1787, %v1738
    %1804 = vst.msk [vmem:[%s3 + $0x40] sm:$0xf] %vm1787, %v1739
    %1805 = vst.msk [vmem:[%s3 + $0x44] sm:$0xf] %vm1787, %v1740
    %1806 = vst.msk [vmem:[%s3 + $0x48] sm:$0xf] %vm1787, %v1741
    %1807 = vst.msk [vmem:[%s3 + $0x4c] sm:$0xf] %vm1787, %v1742
    %1808 = vst.msk [vmem:[%s3 + $0x50] sm:$0xf] %vm1787, %v1743
    %1809 = vst.msk [vmem:[%s3 + $0x54] sm:$0xf] %vm1787, %v1744
    %1810 = vst.msk [vmem:[%s3 + $0x58] sm:$0xf] %vm1787, %v1745
    %1811 = vst.msk [vmem:[%s3 + $0x5c] sm:$0xf] %vm1787, %v1746
    %1812 = vst.msk [vmem:[%s3 + $0x60] sm:$0xf] %vm1787, %v1747
    %1813 = vst.msk [vmem:[%s3 + $0x64] sm:$0xf] %vm1787, %v1748
    %1814 = vst.msk [vmem:[%s3 + $0x68] sm:$0xf] %vm1787, %v1749
    %1815 = vst.msk [vmem:[%s3 + $0x6c] sm:$0xf] %vm1787, %v1750
    %1816 = vst.msk [vmem:[%s3 + $0x70] sm:$0xf] %vm1787, %v1751
    %1817 = vst.msk [vmem:[%s3 + $0x74] sm:$0xf] %vm1787, %v1752
    %1818 = vst.msk [vmem:[%s3 + $0x78] sm:$0xf] %vm1787, %v1753
    %1819 = vst.msk [vmem:[%s3 + $0x7c] sm:$0xf] %vm1787, %v1754
  $region21: #{feed_forward.1} parent=0 // pred_fallthru
    _
  // Predicated region
  $region22: #{feed_forward.1} parent=0 // pred_check
    _
  $region23: #{feed_forward.1} parent=0 // pred_check_branch
    %1821 = sbr.rel (0) target = $region25
  $region24: #{feed_forward.1} parent=0 // pred_region
    _
  $region25: #{feed_forward.1} parent=0 // pred_fallthru
    _
  // Predicated region
  $region26: #{feed_forward.1} parent=0 // pred_check
    _
  $region27: #{feed_forward.1} parent=0 // pred_check_branch
    %1823 = sbr.rel (0) target = $region29
  $region28: #{feed_forward.1} parent=0 // pred_region
    _
  $region29: #{feed_forward.1} parent=0 // pred_fallthru
    _

</llo_original>
